<compile_context>
chip_gen: v6e
topology: v6e:2x2x1
jax: 0.10.0
libtpu: 0.0.40
codegen_flags: <defaults>
</compile_context>

<pallas_src>
import jax
import jax.numpy as jnp
from jax import lax
from jax.experimental import pallas as pl
from jax.experimental.pallas import tpu as pltpu

SLOY = 256          # hidden width from the module
LN_EPS = 1e-5       # torch.nn.LayerNorm default eps


def _round_up(n, m):
    return ((n + m - 1) // m) * m


def _layernorm_f32(h, gamma, beta):
    # Single-pass statistics: one sweep for mean and mean-of-squares.
    mean = jnp.mean(h, axis=-1, keepdims=True)
    msq = jnp.mean(h * h, axis=-1, keepdims=True)
    var = jnp.maximum(msq - mean * mean, 0.0)
    return (h - mean) * lax.rsqrt(var + LN_EPS) * gamma + beta


def critic_kernel(x_ref,
                  w1_ref, b1_ref, g1_ref, be1_ref,
                  w2_ref, b2_ref, g2_ref, be2_ref,
                  w3_ref, b3_ref,
                  o_ref):
    # ---- Linear 1 (bf16 MXU, f32 accumulate) + LayerNorm + ReLU ----
    h = jnp.dot(x_ref[...], w1_ref[...], preferred_element_type=jnp.float32)
    h = h + b1_ref[...]
    h = _layernorm_f32(h, g1_ref[...], be1_ref[...])
    h = jnp.maximum(h, 0.0)

    # ---- Linear 2 (bf16 MXU, f32 accumulate) + LayerNorm + ReLU ----
    h = jnp.dot(h.astype(jnp.bfloat16), w2_ref[...],
                preferred_element_type=jnp.float32)
    h = h + b2_ref[...]
    h = _layernorm_f32(h, g2_ref[...], be2_ref[...])
    h = jnp.maximum(h, 0.0)

    # ---- Final Linear (out_features == 1): VPU multiply-reduce, f32 ----
    v = jnp.sum(h * w3_ref[...], axis=-1) + b3_ref[0, 0]        # (TB,)
    # Lane-dense store: one (1, TB) row per grid step.
    o_ref[...] = v.reshape(1, -1).astype(o_ref.dtype)


def ppo_c_critic_forward(x, params, *, tile_b=512):
    """x: (B, input_dim) float32.  params: dict of weights.  Returns (B, 1) f32."""
    B, input_dim = x.shape

    # Lane-dense batch tile: a multiple of 128, no larger than the padded batch.
    # (TB=512 fits comfortably in every chip's scoped VMEM for moderate
    #  input_dim; cap TB / raise vmem_limit_bytes if input_dim gets very wide.)
    tb = _round_up(min(tile_b, _round_up(B, 128)), 128)
    b_pad = _round_up(B, tb)
    n_tiles = b_pad // tb

    x_p = x if b_pad == B else jnp.pad(x, ((0, b_pad - B), (0, 0)))
    x_p = x_p.astype(jnp.bfloat16)                      # halves x DMA bytes

    # MXU operands in bf16; everything else stays f32.
    w1 = params["w1"].astype(jnp.bfloat16)
    w2 = params["w2"].astype(jnp.bfloat16)
    w3_row = params["w3"].reshape(1, SLOY).astype(jnp.float32)
    b3 = params["b3"].reshape(1, 1).astype(jnp.float32)

    def const2d(a):
        # Weight / LN-param blocks: full array, constant block index ->
        # stays resident in VMEM across the batch grid.
        return pl.BlockSpec(a.shape, lambda i: (0, 0))

    in_specs = [
        pl.BlockSpec((tb, input_dim), lambda i: (i, 0)),                  # x tile
        const2d(w1), const2d(params["b1"]),
        const2d(params["g1"]), const2d(params["be1"]),
        const2d(w2), const2d(params["b2"]),
        const2d(params["g2"]), const2d(params["be2"]),
        const2d(w3_row),
        pl.BlockSpec(memory_space=pltpu.MemorySpace.SMEM),                # b3 scalar
    ]

    out = pl.pallas_call(
        critic_kernel,
        out_shape=jax.ShapeDtypeStruct((1, b_pad), jnp.float32),
        grid=(n_tiles,),
        in_specs=in_specs,
        out_specs=pl.BlockSpec((1, tb), lambda i: (0, i)),
        compiler_params=pltpu.CompilerParams(
            dimension_semantics=("parallel",)),
    )(x_p,
      w1, params["b1"], params["g1"], params["be1"],
      w2, params["b2"], params["g2"], params["be2"],
      w3_row, b3)

    # (1, b_pad) -> (b_pad, 1) -> drop padded rows.
    return out.reshape(b_pad, 1)[:B]


def init_params(key, input_dim):
    """Deterministic synthetic init mirroring the PyTorch module's shapes.
    Linear weights are stored transposed: (in_features, out_features)."""
    ks = jax.random.split(key, 6)

    def linear(kw, kb, fan_in, fan_out):
        bound = 1.0 / jnp.sqrt(jnp.float32(fan_in))
        w = jax.random.uniform(kw, (fan_in, fan_out), jnp.float32, -bound, bound)
        b = jax.random.uniform(kb, (1, fan_out), jnp.float32, -bound, bound)
        return w, b

    w1, b1 = linear(ks[0], ks[1], input_dim, SLOY)
    w2, b2 = linear(ks[2], ks[3], SLOY, SLOY)
    w3, b3 = linear(ks[4], ks[5], SLOY, 1)
    return {
        "w1": w1, "b1": b1,
        "g1": jnp.ones((1, SLOY), jnp.float32), "be1": jnp.zeros((1, SLOY), jnp.float32),
        "w2": w2, "b2": b2,
        "g2": jnp.ones((1, SLOY), jnp.float32), "be2": jnp.zeros((1, SLOY), jnp.float32),
        "w3": w3, "b3": b3,
    }


def reference_forward(x, p):
    """Pure-JAX f32 reference for a sanity check."""
    def ln(h, g, b):
        m = jnp.mean(h, -1, keepdims=True)
        v = jnp.mean((h - m) ** 2, -1, keepdims=True)
        return (h - m) * lax.rsqrt(v + LN_EPS) * g + b
    h = jnp.maximum(ln(x @ p["w1"] + p["b1"], p["g1"], p["be1"]), 0.0)
    h = jnp.maximum(ln(h @ p["w2"] + p["b2"], p["g2"], p["be2"]), 0.0)
    return h @ p["w3"] + p["b3"]


if __name__ == "__main__":
    key = jax.random.PRNGKey(0)
    k_x, k_p = jax.random.split(key)

    batch = 8
    input_dim = 16
    x = jax.random.normal(k_x, (batch, input_dim), jnp.float32)
    params = init_params(k_p, input_dim)

    out = ppo_c_critic_forward(x, params)
    out = jax.block_until_ready(out)

    ref = reference_forward(x, params)
    assert out.shape == (batch, 1)
    # Tolerance loosened vs the pure-f32 reference because the two hidden
    # GEMMs run with bf16 operands (f32 accumulation) on the MXU.
    assert jnp.allclose(out, ref, atol=5e-2, rtol=5e-2), (out, ref)

    print("KERNEL_OK")
</pallas_src>

<mosaic_0001>
module attributes {stable_mosaic.version = 11 : i64} {
  func.func @critic_kernel(%arg0: i32, %arg1: memref<128x16xbf16, #tpu.memory_space<vmem>>, %arg2: memref<16x256xbf16, #tpu.memory_space<vmem>>, %arg3: memref<1x256xf32, #tpu.memory_space<vmem>>, %arg4: memref<1x256xf32, #tpu.memory_space<vmem>>, %arg5: memref<1x256xf32, #tpu.memory_space<vmem>>, %arg6: memref<256x256xbf16, #tpu.memory_space<vmem>>, %arg7: memref<1x256xf32, #tpu.memory_space<vmem>>, %arg8: memref<1x256xf32, #tpu.memory_space<vmem>>, %arg9: memref<1x256xf32, #tpu.memory_space<vmem>>, %arg10: memref<1x256xf32, #tpu.memory_space<vmem>>, %arg11: memref<1x1xf32, #tpu.memory_space<smem>>, %arg12: memref<1x128xf32, #tpu.memory_space<vmem>>) attributes {dimension_semantics = [#tpu.dimension_semantics<parallel>], iteration_bounds = array<i64: 1>, scalar_prefetch = 0 : i64, scratch_operands = 0 : i64, tpu.core_type = #tpu.core_type<tc>, window_params = [{transform_indices = @transform_0, window_bounds = array<i64: 128, 16>}, {pipeline_mode = #tpu.pipeline_mode<synchronous>, transform_indices = @transform_1, window_bounds = array<i64: 16, 256>}, {pipeline_mode = #tpu.pipeline_mode<synchronous>, transform_indices = @transform_2, window_bounds = array<i64: 1, 256>}, {pipeline_mode = #tpu.pipeline_mode<synchronous>, transform_indices = @transform_3, window_bounds = array<i64: 1, 256>}, {pipeline_mode = #tpu.pipeline_mode<synchronous>, transform_indices = @transform_4, window_bounds = array<i64: 1, 256>}, {pipeline_mode = #tpu.pipeline_mode<synchronous>, transform_indices = @transform_5, window_bounds = array<i64: 256, 256>}, {pipeline_mode = #tpu.pipeline_mode<synchronous>, transform_indices = @transform_6, window_bounds = array<i64: 1, 256>}, {pipeline_mode = #tpu.pipeline_mode<synchronous>, transform_indices = @transform_7, window_bounds = array<i64: 1, 256>}, {pipeline_mode = #tpu.pipeline_mode<synchronous>, transform_indices = @transform_8, window_bounds = array<i64: 1, 256>}, {pipeline_mode = #tpu.pipeline_mode<synchronous>, transform_indices = @transform_9, window_bounds = array<i64: 1, 256>}, {transform_indices = @transform_10, window_bounds = array<i64: 1, 1>}, {transform_indices = @transform_11, window_bounds = array<i64: 1, 128>}]} {
    %c0 = arith.constant 0 : index
    %c0_0 = arith.constant 0 : index
    %0 = vector.load %arg1[%c0, %c0_0] : memref<128x16xbf16, #tpu.memory_space<vmem>>, vector<128x16xbf16>
    %c0_1 = arith.constant 0 : index
    %c0_2 = arith.constant 0 : index
    %1 = vector.load %arg2[%c0_1, %c0_2] : memref<16x256xbf16, #tpu.memory_space<vmem>>, vector<16x256xbf16>
    %cst = arith.constant dense<0.000000e+00> : vector<128x256xf32>
    %2 = tpu.matmul %0, %1, %cst {dimension_numbers = #tpu.dot_dimension_numbers<[1], [0], [0], [1], [0, 0, 1, 1], [], []>} : vector<128x16xbf16>, vector<16x256xbf16>, vector<128x256xf32> -> vector<128x256xf32>
    %c0_3 = arith.constant 0 : index
    %c0_4 = arith.constant 0 : index
    %3 = vector.load %arg3[%c0_3, %c0_4] : memref<1x256xf32, #tpu.memory_space<vmem>>, vector<1x256xf32>
    %4 = vector.broadcast %3 : vector<1x256xf32> to vector<128x256xf32>
    %5 = arith.addf %2, %4 : vector<128x256xf32>
    %c0_5 = arith.constant 0 : index
    %c0_6 = arith.constant 0 : index
    %6 = vector.load %arg4[%c0_5, %c0_6] : memref<1x256xf32, #tpu.memory_space<vmem>>, vector<1x256xf32>
    %c0_7 = arith.constant 0 : index
    %c0_8 = arith.constant 0 : index
    %7 = vector.load %arg5[%c0_7, %c0_8] : memref<1x256xf32, #tpu.memory_space<vmem>>, vector<1x256xf32>
    %cst_9 = arith.constant dense<0.000000e+00> : vector<128xf32>
    %8 = vector.multi_reduction <add>, %5, %cst_9 [1] : vector<128x256xf32> to vector<128xf32>
    %9 = vector.shape_cast %8 : vector<128xf32> to vector<128x1xf32>
    %cst_10 = arith.constant 2.560000e+02 : f32
    %10 = vector.broadcast %cst_10 : f32 to vector<128x1xf32>
    %11 = arith.divf %9, %10 : vector<128x1xf32>
    %12 = arith.mulf %5, %5 : vector<128x256xf32>
    %cst_11 = arith.constant dense<0.000000e+00> : vector<128xf32>
    %13 = vector.multi_reduction <add>, %12, %cst_11 [1] : vector<128x256xf32> to vector<128xf32>
    %14 = vector.shape_cast %13 : vector<128xf32> to vector<128x1xf32>
    %cst_12 = arith.constant 2.560000e+02 : f32
    %15 = vector.broadcast %cst_12 : f32 to vector<128x1xf32>
    %16 = arith.divf %14, %15 : vector<128x1xf32>
    %17 = arith.mulf %11, %11 : vector<128x1xf32>
    %18 = arith.subf %16, %17 : vector<128x1xf32>
    %cst_13 = arith.constant 0.000000e+00 : f32
    %19 = vector.broadcast %cst_13 : f32 to vector<128x1xf32>
    %20 = arith.maximumf %18, %19 : vector<128x1xf32>
    %21 = vector.broadcast %11 : vector<128x1xf32> to vector<128x256xf32>
    %22 = arith.subf %5, %21 : vector<128x256xf32>
    %cst_14 = arith.constant 9.99999974E-6 : f32
    %23 = vector.broadcast %cst_14 : f32 to vector<128x1xf32>
    %24 = arith.addf %20, %23 : vector<128x1xf32>
    %25 = math.rsqrt %24 : vector<128x1xf32>
    %26 = vector.broadcast %25 : vector<128x1xf32> to vector<128x256xf32>
    %27 = arith.mulf %22, %26 : vector<128x256xf32>
    %28 = vector.broadcast %6 : vector<1x256xf32> to vector<128x256xf32>
    %29 = arith.mulf %27, %28 : vector<128x256xf32>
    %30 = vector.broadcast %7 : vector<1x256xf32> to vector<128x256xf32>
    %31 = arith.addf %29, %30 : vector<128x256xf32>
    %cst_15 = arith.constant 0.000000e+00 : f32
    %32 = vector.broadcast %cst_15 : f32 to vector<128x256xf32>
    %33 = arith.maximumf %31, %32 : vector<128x256xf32>
    %34 = arith.truncf %33 : vector<128x256xf32> to vector<128x256xbf16>
    %c0_16 = arith.constant 0 : index
    %c0_17 = arith.constant 0 : index
    %35 = vector.load %arg6[%c0_16, %c0_17] : memref<256x256xbf16, #tpu.memory_space<vmem>>, vector<256x256xbf16>
    %cst_18 = arith.constant dense<0.000000e+00> : vector<128x256xf32>
    %36 = tpu.matmul %34, %35, %cst_18 {dimension_numbers = #tpu.dot_dimension_numbers<[1], [0], [0], [1], [0, 0, 1, 1], [], []>} : vector<128x256xbf16>, vector<256x256xbf16>, vector<128x256xf32> -> vector<128x256xf32>
    %c0_19 = arith.constant 0 : index
    %c0_20 = arith.constant 0 : index
    %37 = vector.load %arg7[%c0_19, %c0_20] : memref<1x256xf32, #tpu.memory_space<vmem>>, vector<1x256xf32>
    %38 = vector.broadcast %37 : vector<1x256xf32> to vector<128x256xf32>
    %39 = arith.addf %36, %38 : vector<128x256xf32>
    %c0_21 = arith.constant 0 : index
    %c0_22 = arith.constant 0 : index
    %40 = vector.load %arg8[%c0_21, %c0_22] : memref<1x256xf32, #tpu.memory_space<vmem>>, vector<1x256xf32>
    %c0_23 = arith.constant 0 : index
    %c0_24 = arith.constant 0 : index
    %41 = vector.load %arg9[%c0_23, %c0_24] : memref<1x256xf32, #tpu.memory_space<vmem>>, vector<1x256xf32>
    %cst_25 = arith.constant dense<0.000000e+00> : vector<128xf32>
    %42 = vector.multi_reduction <add>, %39, %cst_25 [1] : vector<128x256xf32> to vector<128xf32>
    %43 = vector.shape_cast %42 : vector<128xf32> to vector<128x1xf32>
    %cst_26 = arith.constant 2.560000e+02 : f32
    %44 = vector.broadcast %cst_26 : f32 to vector<128x1xf32>
    %45 = arith.divf %43, %44 : vector<128x1xf32>
    %46 = arith.mulf %39, %39 : vector<128x256xf32>
    %cst_27 = arith.constant dense<0.000000e+00> : vector<128xf32>
    %47 = vector.multi_reduction <add>, %46, %cst_27 [1] : vector<128x256xf32> to vector<128xf32>
    %48 = vector.shape_cast %47 : vector<128xf32> to vector<128x1xf32>
    %cst_28 = arith.constant 2.560000e+02 : f32
    %49 = vector.broadcast %cst_28 : f32 to vector<128x1xf32>
    %50 = arith.divf %48, %49 : vector<128x1xf32>
    %51 = arith.mulf %45, %45 : vector<128x1xf32>
    %52 = arith.subf %50, %51 : vector<128x1xf32>
    %cst_29 = arith.constant 0.000000e+00 : f32
    %53 = vector.broadcast %cst_29 : f32 to vector<128x1xf32>
    %54 = arith.maximumf %52, %53 : vector<128x1xf32>
    %55 = vector.broadcast %45 : vector<128x1xf32> to vector<128x256xf32>
    %56 = arith.subf %39, %55 : vector<128x256xf32>
    %cst_30 = arith.constant 9.99999974E-6 : f32
    %57 = vector.broadcast %cst_30 : f32 to vector<128x1xf32>
    %58 = arith.addf %54, %57 : vector<128x1xf32>
    %59 = math.rsqrt %58 : vector<128x1xf32>
    %60 = vector.broadcast %59 : vector<128x1xf32> to vector<128x256xf32>
    %61 = arith.mulf %56, %60 : vector<128x256xf32>
    %62 = vector.broadcast %40 : vector<1x256xf32> to vector<128x256xf32>
    %63 = arith.mulf %61, %62 : vector<128x256xf32>
    %64 = vector.broadcast %41 : vector<1x256xf32> to vector<128x256xf32>
    %65 = arith.addf %63, %64 : vector<128x256xf32>
    %cst_31 = arith.constant 0.000000e+00 : f32
    %66 = vector.broadcast %cst_31 : f32 to vector<128x256xf32>
    %67 = arith.maximumf %65, %66 : vector<128x256xf32>
    %c0_32 = arith.constant 0 : index
    %c0_33 = arith.constant 0 : index
    %68 = vector.load %arg10[%c0_32, %c0_33] : memref<1x256xf32, #tpu.memory_space<vmem>>, vector<1x256xf32>
    %69 = vector.broadcast %68 : vector<1x256xf32> to vector<128x256xf32>
    %70 = arith.mulf %67, %69 : vector<128x256xf32>
    %cst_34 = arith.constant dense<0.000000e+00> : vector<128xf32>
    %71 = vector.multi_reduction <add>, %70, %cst_34 [1] : vector<128x256xf32> to vector<128xf32>
    %c0_35 = arith.constant 0 : index
    %c0_36 = arith.constant 0 : index
    %72 = memref.load %arg11[%c0_35, %c0_36] : memref<1x1xf32, #tpu.memory_space<smem>>
    %73 = vector.broadcast %72 : f32 to vector<128xf32>
    %74 = arith.addf %71, %73 : vector<128xf32>
    %75 = vector.shape_cast %74 : vector<128xf32> to vector<1x128xf32>
    %c0_37 = arith.constant 0 : index
    %c0_38 = arith.constant 0 : index
    %76 = vector.load %arg12[%c0_37, %c0_38] : memref<1x128xf32, #tpu.memory_space<vmem>>, vector<1x128xf32>
    tpu.vector_store %arg12[%c0_37, %c0_38], %75 {strides = array<i32>} : memref<1x128xf32, #tpu.memory_space<vmem>>, vector<1x128xf32>,
    return
  }
  func.func @transform_0(%arg0: i32) -> (i32, i32) {
    %c0_i32 = arith.constant 0 : i32
    %c0_i32_0 = arith.constant 0 : i32
    return %arg0, %c0_i32 : i32, i32
  }
  func.func @transform_1(%arg0: i32) -> (i32, i32) {
    %c0_i32 = arith.constant 0 : i32
    %c0_i32_0 = arith.constant 0 : i32
    %c0_i32_1 = arith.constant 0 : i32
    return %c0_i32, %c0_i32_0 : i32, i32
  }
  func.func @transform_2(%arg0: i32) -> (i32, i32) {
    %c0_i32 = arith.constant 0 : i32
    %c0_i32_0 = arith.constant 0 : i32
    %c0_i32_1 = arith.constant 0 : i32
    return %c0_i32, %c0_i32_0 : i32, i32
  }
  func.func @transform_3(%arg0: i32) -> (i32, i32) {
    %c0_i32 = arith.constant 0 : i32
    %c0_i32_0 = arith.constant 0 : i32
    %c0_i32_1 = arith.constant 0 : i32
    return %c0_i32, %c0_i32_0 : i32, i32
  }
  func.func @transform_4(%arg0: i32) -> (i32, i32) {
    %c0_i32 = arith.constant 0 : i32
    %c0_i32_0 = arith.constant 0 : i32
    %c0_i32_1 = arith.constant 0 : i32
    return %c0_i32, %c0_i32_0 : i32, i32
  }
  func.func @transform_5(%arg0: i32) -> (i32, i32) {
    %c0_i32 = arith.constant 0 : i32
    %c0_i32_0 = arith.constant 0 : i32
    %c0_i32_1 = arith.constant 0 : i32
    return %c0_i32, %c0_i32_0 : i32, i32
  }
  func.func @transform_6(%arg0: i32) -> (i32, i32) {
    %c0_i32 = arith.constant 0 : i32
    %c0_i32_0 = arith.constant 0 : i32
    %c0_i32_1 = arith.constant 0 : i32
    return %c0_i32, %c0_i32_0 : i32, i32
  }
  func.func @transform_7(%arg0: i32) -> (i32, i32) {
    %c0_i32 = arith.constant 0 : i32
    %c0_i32_0 = arith.constant 0 : i32
    %c0_i32_1 = arith.constant 0 : i32
    return %c0_i32, %c0_i32_0 : i32, i32
  }
  func.func @transform_8(%arg0: i32) -> (i32, i32) {
    %c0_i32 = arith.constant 0 : i32
    %c0_i32_0 = arith.constant 0 : i32
    %c0_i32_1 = arith.constant 0 : i32
    return %c0_i32, %c0_i32_0 : i32, i32
  }
  func.func @transform_9(%arg0: i32) -> (i32, i32) {
    %c0_i32 = arith.constant 0 : i32
    %c0_i32_0 = arith.constant 0 : i32
    %c0_i32_1 = arith.constant 0 : i32
    return %c0_i32, %c0_i32_0 : i32, i32
  }
  func.func @transform_10(%arg0: i32) -> (i32, i32) {
    %c0_i32 = arith.constant 0 : i32
    %c0_i32_0 = arith.constant 0 : i32
    %c0_i32_1 = arith.constant 0 : i32
    return %c0_i32, %c0_i32_0 : i32, i32
  }
  func.func @transform_11(%arg0: i32) -> (i32, i32) {
    %c0_i32 = arith.constant 0 : i32
    %c0_i32_0 = arith.constant 0 : i32
    return %c0_i32, %arg0 : i32, i32
  }
}

</mosaic_0001>

<llo_original>
// kernel: tpu_custom_call.1
$region0: #{tpu_custom_call.1}
  #allocation0 [shape = 'u32[]', space=smem, size = 0x4, offset = 0x4, fixed_abs, tag = 'smem constant byte address 0x4 - core index']
  #allocation1 [shape = 'u32[144,128]{1,0:T(1,128)}', space=vmem, size = 0x12000, scoped, tag = 'internal scratch']
  #allocation2 [shape = 'f32[1,1]{1,0:T(1,128)S(6)}', space=smem, size = 0x200, scoped, tag = 'scoped memory for tpu_custom_call.1']
  %s0 = inlined_call_operand.vmem [shape: bf16[128,16], index: 0, kind: input, shape index: {}]
  %s1 = inlined_call_operand.vmem [shape: bf16[16,256], index: 1, kind: input, shape index: {}]
  %s2 = inlined_call_operand.vmem [shape: f32[1,256], index: 2, kind: input, shape index: {}]
  %s3 = inlined_call_operand.vmem [shape: f32[1,256], index: 3, kind: input, shape index: {}]
  %s4 = inlined_call_operand.vmem [shape: f32[1,256], index: 4, kind: input, shape index: {}]
  %s5 = inlined_call_operand.hbm [shape: bf16[256,256], index: 5, kind: input, shape index: {}]
  %s6 = inlined_call_operand.vmem [shape: f32[1,256], index: 6, kind: input, shape index: {}]
  %s7 = inlined_call_operand.vmem [shape: f32[1,256], index: 7, kind: input, shape index: {}]
  %s8 = inlined_call_operand.vmem [shape: f32[1,256], index: 8, kind: input, shape index: {}]
  %s9 = inlined_call_operand.vmem [shape: f32[1,256], index: 9, kind: input, shape index: {}]
  %s10 = inlined_call_operand.<no memory space> [shape: f32[1,1], index: 10, kind: input, shape index: {}]
  %s11 = inlined_call_operand.hbm [shape: f32[1,128], index: 11, kind: output, shape index: {}]
  %s12 = sld [smem:[#allocation0]]
  $region58: #{tpu_custom_call.1} parent=0
    _
  %s14 = ssub.s32 1, %s12
  %s15 = scalar_select 0, %s14, %s12
  %16 = sst [smem:[#allocation2]] %s10
  $region1: #{tpu_custom_call.1} parent=0
    #allocation3 [shape = 'u8[131072]{0}', space=vmem, size = 0x20000, scoped, tag = 'input window, operand 5, single buffered']
    #allocation4 [shape = 's32[1]{0}', space=sflag, size = 0x4, scoped, tag = 'scoped memory for tpu_custom_call.1']
    #allocation5 [shape = 's32[1]{0}', space=sflag, size = 0x4, scoped, tag = 'scoped memory for tpu_custom_call.1']
    #allocation6 [shape = 'u8[512]{0}', space=vmem, size = 0x400, scoped, tag = 'output window, operand 0, single buffered']
    %17 = vsyncpa [#allocation4], 0
    %18 = vsyncpa [#allocation5], 0
    // Predicated region
    $region2: #{tpu_custom_call.1} parent=1 // pred_check
      _
    $region3: #{tpu_custom_call.1} parent=1 // pred_check_branch
      %20 = sbr.rel (0) target = $region5
    $region4: #{tpu_custom_call.1} parent=1 // pred_region
      _
    $region5: #{tpu_custom_call.1} parent=1 // pred_fallthru
      _
    // Predicated region
    $region6: #{tpu_custom_call.1} parent=1 // pred_check
      _
    $region7: #{tpu_custom_call.1} parent=1 // pred_check_branch
      %22 = sbr.rel (0) target = $region9
    $region8: #{tpu_custom_call.1} parent=1 // pred_region
      _
    $region9: #{tpu_custom_call.1} parent=1 // pred_fallthru
      _
    // Predicated region
    $region10: #{tpu_custom_call.1} parent=1 // pred_check
      _
    $region11: #{tpu_custom_call.1} parent=1 // pred_check_branch
      %24 = sbr.rel (0) target = $region13
    $region12: #{tpu_custom_call.1} parent=1 // pred_region
      _
    $region13: #{tpu_custom_call.1} parent=1 // pred_fallthru
      _
    // Predicated region
    $region14: #{tpu_custom_call.1} parent=1 // pred_check
      _
    $region15: #{tpu_custom_call.1} parent=1 // pred_check_branch
      %26 = sbr.rel (0) target = $region17
    $region16: #{tpu_custom_call.1} parent=1 // pred_region
      _
    $region17: #{tpu_custom_call.1} parent=1 // pred_fallthru
      _
    // Predicated region
    $region18: #{tpu_custom_call.1} parent=1 // pred_check
      _
    $region19: #{tpu_custom_call.1} parent=1 // pred_check_branch
      %28 = sbr.rel (0) target = $region21
    $region20: #{tpu_custom_call.1} parent=1 // pred_region
      _
    $region21: #{tpu_custom_call.1} parent=1 // pred_fallthru
      _
    // Predicated region
    $region22: #{tpu_custom_call.1} parent=1 // pred_check
      _
    $region23: #{tpu_custom_call.1} parent=1 // pred_check_branch
      %30 = sbr.rel (0) target = $region25
    $region24: #{tpu_custom_call.1} parent=1 // pred_region
      %s32 = ssub.s32 4096, 4096
      %33 = vsyncadd [#allocation4], %s32
      %s34 = sshll.u32 [#allocation3], 4
      %s35 = int_to_ptr.vmem [resolvable:$true] %s34
      %40 = dma.hbm_to_vmem [thread:$0]  %s5, 4096, %s35, [#allocation4], 128, 128, 8
    $region25: #{tpu_custom_call.1} parent=1 // pred_fallthru
      _
    // Predicated region
    $region26: #{tpu_custom_call.1} parent=1 // pred_check
      _
    $region27: #{tpu_custom_call.1} parent=1 // pred_check_branch
      %42 = sbr.rel (0) target = $region29
    $region28: #{tpu_custom_call.1} parent=1 // pred_region
      _
    $region29: #{tpu_custom_call.1} parent=1 // pred_fallthru
      _
    // Predicated region
    $region30: #{tpu_custom_call.1} parent=1 // pred_check
      _
    $region31: #{tpu_custom_call.1} parent=1 // pred_check_branch
      %44 = sbr.rel (0) target = $region33
    $region32: #{tpu_custom_call.1} parent=1 // pred_region
      _
    $region33: #{tpu_custom_call.1} parent=1 // pred_fallthru
      _
    // Predicated region
    $region34: #{tpu_custom_call.1} parent=1 // pred_check
      _
    $region35: #{tpu_custom_call.1} parent=1 // pred_check_branch
      %46 = sbr.rel (0) target = $region37
    $region36: #{tpu_custom_call.1} parent=1 // pred_region
      _
    $region37: #{tpu_custom_call.1} parent=1 // pred_fallthru
      _
    // Predicated region
    $region38: #{tpu_custom_call.1} parent=1 // pred_check
      _
    $region39: #{tpu_custom_call.1} parent=1 // pred_check_branch
      %48 = sbr.rel (0) target = $region41
    $region40: #{tpu_custom_call.1} parent=1 // pred_region
      _
    $region41: #{tpu_custom_call.1} parent=1 // pred_fallthru
      _
    // Predicated region
    $region42: #{tpu_custom_call.1} parent=1 // pred_check
      _
    $region43: #{tpu_custom_call.1} parent=1 // pred_check_branch
      %50 = sbr.rel (0) target = $region45
    $region44: #{tpu_custom_call.1} parent=1 // pred_region
      _
    $region45: #{tpu_custom_call.1} parent=1 // pred_fallthru
      _
    // Predicated region
    $region46: #{tpu_custom_call.1} parent=1 // pred_check
      _
    $region47: #{tpu_custom_call.1} parent=1 // pred_check_branch
      %52 = sbr.rel (0) target = $region49
    $region48: #{tpu_custom_call.1} parent=1 // pred_region
      %53 = dma.done [#allocation4], 4096
    $region49: #{tpu_custom_call.1} parent=1 // pred_fallthru
      _
    %v55 = vld [vmem:[%s0] sm:$0xf]
    %v56 = vld [vmem:[%s0 + $0x4] sm:$0xf]
    %v57 = vld [vmem:[%s0 + $0x8] sm:$0xf]
    %v58 = vld [vmem:[%s0 + $0xc] sm:$0xf]
    %v59 = vld [vmem:[%s0 + $0x10] sm:$0xf]
    %v60 = vld [vmem:[%s0 + $0x14] sm:$0xf]
    %v61 = vld [vmem:[%s0 + $0x18] sm:$0xf]
    %v62 = vld [vmem:[%s0 + $0x1c] sm:$0xf]
    %v63 = vld [vmem:[%s0 + $0x20] sm:$0xf]
    %v64 = vld [vmem:[%s0 + $0x24] sm:$0xf]
    %v65 = vld [vmem:[%s0 + $0x28] sm:$0xf]
    %v66 = vld [vmem:[%s0 + $0x2c] sm:$0xf]
    %v67 = vld [vmem:[%s0 + $0x30] sm:$0xf]
    %v68 = vld [vmem:[%s0 + $0x34] sm:$0xf]
    %v69 = vld [vmem:[%s0 + $0x38] sm:$0xf]
    %v70 = vld [vmem:[%s0 + $0x3c] sm:$0xf]
    %v71 = vld [vmem:[%s1] sm:$0xff]
    %v72 = vld [vmem:[%s1 + $0x8] sm:$0xff]
    %v73 = vld [vmem:[%s2] sm:$0x3]
    %v75 = vlaneseq
    %v76 = vshrl.u32 %v75, 7
    %v77 = vsub.s32 0, %v76
    %v78 = vrot.slane %v73, %v77
    %v79 = vlaneseq
    %v80 = vshrl.u32 %v79, 7
    %v81 = vsub.s32 1, %v80
    %v82 = vrot.slane %v73, %v81
    %v101 = vunpack.c.l.b16 %v55
    %v102 = vunpack.c.l.b16 %v56
    %v103 = vunpack.c.l.b16 %v57
    %v104 = vunpack.c.l.b16 %v58
    %v105 = vunpack.c.l.b16 %v59
    %v106 = vunpack.c.l.b16 %v60
    %v107 = vunpack.c.l.b16 %v61
    %v108 = vunpack.c.l.b16 %v62
    %v109 = vunpack.c.l.b16 %v63
    %v110 = vunpack.c.l.b16 %v64
    %v111 = vunpack.c.l.b16 %v65
    %v112 = vunpack.c.l.b16 %v66
    %v113 = vunpack.c.l.b16 %v67
    %v114 = vunpack.c.l.b16 %v68
    %v115 = vunpack.c.l.b16 %v69
    %v116 = vunpack.c.l.b16 %v70
    %v117 = vpack.c.b16 %v102, %v101
    %v118 = vpack.c.b16 %v104, %v103
    %v119 = vpack.c.b16 %v106, %v105
    %v120 = vpack.c.b16 %v108, %v107
    %v121 = vpack.c.b16 %v110, %v109
    %v122 = vpack.c.b16 %v112, %v111
    %v123 = vpack.c.b16 %v114, %v113
    %v124 = vpack.c.b16 %v116, %v115
    %v127 = vunpack.c.l.b16 %v71
    %v128 = vunpack.c.h.b16 %v71
    %v129 = vunpack.c.l.b16 %v72
    %v130 = vunpack.c.h.b16 %v72
    %v131 = vpack.c.b16 %v129, %v127
    %v132 = vpack.c.b16 %v130, %v128
    %vm135 = vcmask 130048
    %v137 = vsel %vm135, %v117, 0
    %v140 = vsel %vm135, %v118, 0
    %v143 = vsel %vm135, %v119, 0
    %v146 = vsel %vm135, %v120, 0
    %v149 = vsel %vm135, %v121, 0
    %v152 = vsel %vm135, %v122, 0
    %v155 = vsel %vm135, %v123, 0
    %v158 = vsel %vm135, %v124, 0
    %160 = vmatprep.subr.bf16.mxu0 0
    %161 = vmatpush1.bf16.msra.mxu0 0
    %162 = vmatprep.subr.bf16.mxu0 0
    %163 = vmatpush1.bf16.msra.mxu0 0
    %164 = vmatprep.subr.bf16.mxu0 0
    %165 = vmatpush1.bf16.msra.mxu0 0
    %166 = vmatprep.subr.bf16.mxu0 0
    %167 = vmatpush1.bf16.msra.mxu0 0
    %168 = vmatprep.subr.bf16.mxu0 0
    %169 = vmatpush1.bf16.msra.mxu0 0
    %170 = vmatprep.subr.bf16.mxu0 0
    %171 = vmatpush1.bf16.msra.mxu0 0
    %172 = vmatprep.subr.bf16.mxu0 0
    %173 = vmatpush1.bf16.msra.mxu0 0
    %174 = vmatprep.subr.bf16.mxu0 %v132
    %175 = vmatpush1.bf16.msra.mxu0 %v131
    %176 = vmatprep.subr.bf16.mxu0 0
    %177 = vmatpush2.bf16.msra.mxu0 0
    %178 = vmatprep.subr.bf16.mxu0 0
    %179 = vmatpush2.bf16.msra.mxu0 0
    %180 = vmatprep.subr.bf16.mxu0 0
    %181 = vmatpush2.bf16.msra.mxu0 0
    %182 = vmatprep.subr.bf16.mxu0 0
    %183 = vmatpush2.bf16.msra.mxu0 0
    %184 = vmatprep.subr.bf16.mxu0 0
    %185 = vmatpush2.bf16.msra.mxu0 0
    %186 = vmatprep.subr.bf16.mxu0 0
    %187 = vmatpush2.bf16.msra.mxu0 0
    %188 = vmatprep.subr.bf16.mxu0 0
    %189 = vmatpush2.bf16.msra.mxu0 0
    %190 = vmatprep.subr.bf16.mxu0 0
    %191 = vmatpush2.bf16.msra.mxu0 0
    %192 = vmatprep.mubr.bf16.mxu0 0
    %193 = vmatmul.mubr.bf16.gmra.mxu0 %v137
    %v194 = vpop.f32.mrf.mxu0
    %v195 = vadd.f32 %v78, %v194
    %v196 = vpop.f32.mrf.mxu0
    %v197 = vadd.f32 %v82, %v196
    %v198 = vpop.f32.mrf.mxu0
    %v199 = vadd.f32 %v78, %v198
    %v200 = vpop.f32.mrf.mxu0
    %v201 = vadd.f32 %v82, %v200
    %202 = vmatprep.mubr.bf16.mxu0 0
    %203 = vmatmul.mubr.bf16.gmra.mxu0 %v140
    %v204 = vpop.f32.mrf.mxu0
    %v205 = vadd.f32 %v78, %v204
    %v206 = vpop.f32.mrf.mxu0
    %v207 = vadd.f32 %v82, %v206
    %v208 = vpop.f32.mrf.mxu0
    %v209 = vadd.f32 %v78, %v208
    %v210 = vpop.f32.mrf.mxu0
    %v211 = vadd.f32 %v82, %v210
    %212 = vmatprep.mubr.bf16.mxu0 0
    %213 = vmatmul.mubr.bf16.gmra.mxu0 %v143
    %v214 = vpop.f32.mrf.mxu0
    %v215 = vadd.f32 %v78, %v214
    %v216 = vpop.f32.mrf.mxu0
    %v217 = vadd.f32 %v82, %v216
    %v218 = vpop.f32.mrf.mxu0
    %v219 = vadd.f32 %v78, %v218
    %v220 = vpop.f32.mrf.mxu0
    %v221 = vadd.f32 %v82, %v220
    %222 = vmatprep.mubr.bf16.mxu0 0
    %223 = vmatmul.mubr.bf16.gmra.mxu0 %v146
    %v224 = vpop.f32.mrf.mxu0
    %v225 = vadd.f32 %v78, %v224
    %v226 = vpop.f32.mrf.mxu0
    %v227 = vadd.f32 %v82, %v226
    %v228 = vpop.f32.mrf.mxu0
    %v229 = vadd.f32 %v78, %v228
    %v230 = vpop.f32.mrf.mxu0
    %v231 = vadd.f32 %v82, %v230
    %232 = vmatprep.mubr.bf16.mxu0 0
    %233 = vmatmul.mubr.bf16.gmra.mxu0 %v149
    %v234 = vpop.f32.mrf.mxu0
    %v235 = vadd.f32 %v78, %v234
    %v236 = vpop.f32.mrf.mxu0
    %v237 = vadd.f32 %v82, %v236
    %v238 = vpop.f32.mrf.mxu0
    %v239 = vadd.f32 %v78, %v238
    %v240 = vpop.f32.mrf.mxu0
    %v241 = vadd.f32 %v82, %v240
    %242 = vmatprep.mubr.bf16.mxu0 0
    %243 = vmatmul.mubr.bf16.gmra.mxu0 %v152
    %v244 = vpop.f32.mrf.mxu0
    %v245 = vadd.f32 %v78, %v244
    %v246 = vpop.f32.mrf.mxu0
    %v247 = vadd.f32 %v82, %v246
    %v248 = vpop.f32.mrf.mxu0
    %v249 = vadd.f32 %v78, %v248
    %v250 = vpop.f32.mrf.mxu0
    %v251 = vadd.f32 %v82, %v250
    %252 = vmatprep.mubr.bf16.mxu0 0
    %253 = vmatmul.mubr.bf16.gmra.mxu0 %v155
    %v254 = vpop.f32.mrf.mxu0
    %v255 = vadd.f32 %v78, %v254
    %v256 = vpop.f32.mrf.mxu0
    %v257 = vadd.f32 %v82, %v256
    %v258 = vpop.f32.mrf.mxu0
    %v259 = vadd.f32 %v78, %v258
    %v260 = vpop.f32.mrf.mxu0
    %v261 = vadd.f32 %v82, %v260
    %262 = vmatprep.mubr.bf16.mxu0 0
    %263 = vmatmul.mubr.bf16.gmra.mxu0 %v158
    %v264 = vpop.f32.mrf.mxu0
    %v265 = vadd.f32 %v78, %v264
    %v266 = vpop.f32.mrf.mxu0
    %v267 = vadd.f32 %v82, %v266
    %v268 = vpop.f32.mrf.mxu0
    %v269 = vadd.f32 %v78, %v268
    %v270 = vpop.f32.mrf.mxu0
    %v271 = vadd.f32 %v82, %v270
    %272 = vdwg.mxu0
    %v273 = vld [vmem:[%s3] sm:$0x3]
    %v274 = vld [vmem:[%s4] sm:$0x3]
    %v275 = vadd.f32 %v195, %v197
    %276 = vadd.xlane.f32.xlu0 %v275
    %v277 = vpop.xlane.xlu0 %276
    %v278 = vadd.f32 %v199, %v201
    %279 = vadd.xlane.f32.xlu0 %v278
    %v280 = vpop.xlane.xlu0 %279
    %v281 = vadd.f32 %v205, %v207
    %282 = vadd.xlane.f32.xlu0 %v281
    %v283 = vpop.xlane.xlu0 %282
    %v284 = vadd.f32 %v209, %v211
    %285 = vadd.xlane.f32.xlu0 %v284
    %v286 = vpop.xlane.xlu0 %285
    %v287 = vadd.f32 %v215, %v217
    %288 = vadd.xlane.f32.xlu0 %v287
    %v289 = vpop.xlane.xlu0 %288
    %v290 = vadd.f32 %v219, %v221
    %291 = vadd.xlane.f32.xlu0 %v290
    %v292 = vpop.xlane.xlu0 %291
    %v293 = vadd.f32 %v225, %v227
    %294 = vadd.xlane.f32.xlu0 %v293
    %v295 = vpop.xlane.xlu0 %294
    %v296 = vadd.f32 %v229, %v231
    %297 = vadd.xlane.f32.xlu0 %v296
    %v298 = vpop.xlane.xlu0 %297
    %v299 = vadd.f32 %v235, %v237
    %300 = vadd.xlane.f32.xlu0 %v299
    %v301 = vpop.xlane.xlu0 %300
    %v302 = vadd.f32 %v239, %v241
    %303 = vadd.xlane.f32.xlu0 %v302
    %v304 = vpop.xlane.xlu0 %303
    %v305 = vadd.f32 %v245, %v247
    %306 = vadd.xlane.f32.xlu0 %v305
    %v307 = vpop.xlane.xlu0 %306
    %v308 = vadd.f32 %v249, %v251
    %309 = vadd.xlane.f32.xlu0 %v308
    %v310 = vpop.xlane.xlu0 %309
    %v311 = vadd.f32 %v255, %v257
    %312 = vadd.xlane.f32.xlu0 %v311
    %v313 = vpop.xlane.xlu0 %312
    %v314 = vadd.f32 %v259, %v261
    %315 = vadd.xlane.f32.xlu0 %v314
    %v316 = vpop.xlane.xlu0 %315
    %v317 = vadd.f32 %v265, %v267
    %318 = vadd.xlane.f32.xlu0 %v317
    %v319 = vpop.xlane.xlu0 %318
    %v320 = vadd.f32 %v269, %v271
    %321 = vadd.xlane.f32.xlu0 %v320
    %v322 = vpop.xlane.xlu0 %321
    %v323 = vrcp.pop 256.0
    %v324 = vmul.f32 %v277, %v323
    %v325 = vmul.f32 %v280, %v323
    %v326 = vmul.f32 %v283, %v323
    %v327 = vmul.f32 %v286, %v323
    %v328 = vmul.f32 %v289, %v323
    %v329 = vmul.f32 %v292, %v323
    %v330 = vmul.f32 %v295, %v323
    %v331 = vmul.f32 %v298, %v323
    %v332 = vmul.f32 %v301, %v323
    %v333 = vmul.f32 %v304, %v323
    %v334 = vmul.f32 %v307, %v323
    %v335 = vmul.f32 %v310, %v323
    %v336 = vmul.f32 %v313, %v323
    %v337 = vmul.f32 %v316, %v323
    %v338 = vmul.f32 %v319, %v323
    %v339 = vmul.f32 %v322, %v323
    %v340 = vmul.f32 %v195, %v195
    %v341 = vmul.f32 %v197, %v197
    %v342 = vmul.f32 %v199, %v199
    %v343 = vmul.f32 %v201, %v201
    %v344 = vmul.f32 %v205, %v205
    %v345 = vmul.f32 %v207, %v207
    %v346 = vmul.f32 %v209, %v209
    %v347 = vmul.f32 %v211, %v211
    %v348 = vmul.f32 %v215, %v215
    %v349 = vmul.f32 %v217, %v217
    %v350 = vmul.f32 %v219, %v219
    %v351 = vmul.f32 %v221, %v221
    %v352 = vmul.f32 %v225, %v225
    %v353 = vmul.f32 %v227, %v227
    %v354 = vmul.f32 %v229, %v229
    %v355 = vmul.f32 %v231, %v231
    %v356 = vmul.f32 %v235, %v235
    %v357 = vmul.f32 %v237, %v237
    %v358 = vmul.f32 %v239, %v239
    %v359 = vmul.f32 %v241, %v241
    %v360 = vmul.f32 %v245, %v245
    %v361 = vmul.f32 %v247, %v247
    %v362 = vmul.f32 %v249, %v249
    %v363 = vmul.f32 %v251, %v251
    %v364 = vmul.f32 %v255, %v255
    %v365 = vmul.f32 %v257, %v257
    %v366 = vmul.f32 %v259, %v259
    %v367 = vmul.f32 %v261, %v261
    %v368 = vmul.f32 %v265, %v265
    %v369 = vmul.f32 %v267, %v267
    %v370 = vmul.f32 %v269, %v269
    %v371 = vmul.f32 %v271, %v271
    %v372 = vadd.f32 %v340, %v341
    %373 = vadd.xlane.f32.xlu0 %v372
    %v374 = vpop.xlane.xlu0 %373
    %v375 = vadd.f32 %v342, %v343
    %376 = vadd.xlane.f32.xlu0 %v375
    %v377 = vpop.xlane.xlu0 %376
    %v378 = vadd.f32 %v344, %v345
    %379 = vadd.xlane.f32.xlu0 %v378
    %v380 = vpop.xlane.xlu0 %379
    %v381 = vadd.f32 %v346, %v347
    %382 = vadd.xlane.f32.xlu0 %v381
    %v383 = vpop.xlane.xlu0 %382
    %v384 = vadd.f32 %v348, %v349
    %385 = vadd.xlane.f32.xlu0 %v384
    %v386 = vpop.xlane.xlu0 %385
    %v387 = vadd.f32 %v350, %v351
    %388 = vadd.xlane.f32.xlu0 %v387
    %v389 = vpop.xlane.xlu0 %388
    %v390 = vadd.f32 %v352, %v353
    %391 = vadd.xlane.f32.xlu0 %v390
    %v392 = vpop.xlane.xlu0 %391
    %v393 = vadd.f32 %v354, %v355
    %394 = vadd.xlane.f32.xlu0 %v393
    %v395 = vpop.xlane.xlu0 %394
    %v396 = vadd.f32 %v356, %v357
    %397 = vadd.xlane.f32.xlu0 %v396
    %v398 = vpop.xlane.xlu0 %397
    %v399 = vadd.f32 %v358, %v359
    %400 = vadd.xlane.f32.xlu0 %v399
    %v401 = vpop.xlane.xlu0 %400
    %v402 = vadd.f32 %v360, %v361
    %403 = vadd.xlane.f32.xlu0 %v402
    %v404 = vpop.xlane.xlu0 %403
    %v405 = vadd.f32 %v362, %v363
    %406 = vadd.xlane.f32.xlu0 %v405
    %v407 = vpop.xlane.xlu0 %406
    %v408 = vadd.f32 %v364, %v365
    %409 = vadd.xlane.f32.xlu0 %v408
    %v410 = vpop.xlane.xlu0 %409
    %v411 = vadd.f32 %v366, %v367
    %412 = vadd.xlane.f32.xlu0 %v411
    %v413 = vpop.xlane.xlu0 %412
    %v414 = vadd.f32 %v368, %v369
    %415 = vadd.xlane.f32.xlu0 %v414
    %v416 = vpop.xlane.xlu0 %415
    %v417 = vadd.f32 %v370, %v371
    %418 = vadd.xlane.f32.xlu0 %v417
    %v419 = vpop.xlane.xlu0 %418
    %v420 = vmul.f32 %v374, %v323
    %v421 = vmul.f32 %v377, %v323
    %v422 = vmul.f32 %v380, %v323
    %v423 = vmul.f32 %v383, %v323
    %v424 = vmul.f32 %v386, %v323
    %v425 = vmul.f32 %v389, %v323
    %v426 = vmul.f32 %v392, %v323
    %v427 = vmul.f32 %v395, %v323
    %v428 = vmul.f32 %v398, %v323
    %v429 = vmul.f32 %v401, %v323
    %v430 = vmul.f32 %v404, %v323
    %v431 = vmul.f32 %v407, %v323
    %v432 = vmul.f32 %v410, %v323
    %v433 = vmul.f32 %v413, %v323
    %v434 = vmul.f32 %v416, %v323
    %v435 = vmul.f32 %v419, %v323
    %v436 = vmul.f32 %v324, %v324
    %v437 = vmul.f32 %v325, %v325
    %v438 = vmul.f32 %v326, %v326
    %v439 = vmul.f32 %v327, %v327
    %v440 = vmul.f32 %v328, %v328
    %v441 = vmul.f32 %v329, %v329
    %v442 = vmul.f32 %v330, %v330
    %v443 = vmul.f32 %v331, %v331
    %v444 = vmul.f32 %v332, %v332
    %v445 = vmul.f32 %v333, %v333
    %v446 = vmul.f32 %v334, %v334
    %v447 = vmul.f32 %v335, %v335
    %v448 = vmul.f32 %v336, %v336
    %v449 = vmul.f32 %v337, %v337
    %v450 = vmul.f32 %v338, %v338
    %v451 = vmul.f32 %v339, %v339
    %v452 = vsub.f32 %v420, %v436
    %v453 = vsub.f32 %v421, %v437
    %v454 = vsub.f32 %v422, %v438
    %v455 = vsub.f32 %v423, %v439
    %v456 = vsub.f32 %v424, %v440
    %v457 = vsub.f32 %v425, %v441
    %v458 = vsub.f32 %v426, %v442
    %v459 = vsub.f32 %v427, %v443
    %v460 = vsub.f32 %v428, %v444
    %v461 = vsub.f32 %v429, %v445
    %v462 = vsub.f32 %v430, %v446
    %v463 = vsub.f32 %v431, %v447
    %v464 = vsub.f32 %v432, %v448
    %v465 = vsub.f32 %v433, %v449
    %v466 = vsub.f32 %v434, %v450
    %v467 = vsub.f32 %v435, %v451
    %v468 = vmax.f32 %v452, 0.0
    %v469 = vmax.f32 %v453, 0.0
    %v470 = vmax.f32 %v454, 0.0
    %v471 = vmax.f32 %v455, 0.0
    %v472 = vmax.f32 %v456, 0.0
    %v473 = vmax.f32 %v457, 0.0
    %v474 = vmax.f32 %v458, 0.0
    %v475 = vmax.f32 %v459, 0.0
    %v476 = vmax.f32 %v460, 0.0
    %v477 = vmax.f32 %v461, 0.0
    %v478 = vmax.f32 %v462, 0.0
    %v479 = vmax.f32 %v463, 0.0
    %v480 = vmax.f32 %v464, 0.0
    %v481 = vmax.f32 %v465, 0.0
    %v482 = vmax.f32 %v466, 0.0
    %v483 = vmax.f32 %v467, 0.0
    %v484 = vsub.f32 %v195, %v324
    %v485 = vsub.f32 %v197, %v324
    %v486 = vsub.f32 %v199, %v325
    %v487 = vsub.f32 %v201, %v325
    %v488 = vsub.f32 %v205, %v326
    %v489 = vsub.f32 %v207, %v326
    %v490 = vsub.f32 %v209, %v327
    %v491 = vsub.f32 %v211, %v327
    %v492 = vsub.f32 %v215, %v328
    %v493 = vsub.f32 %v217, %v328
    %v494 = vsub.f32 %v219, %v329
    %v495 = vsub.f32 %v221, %v329
    %v496 = vsub.f32 %v225, %v330
    %v497 = vsub.f32 %v227, %v330
    %v498 = vsub.f32 %v229, %v331
    %v499 = vsub.f32 %v231, %v331
    %v500 = vsub.f32 %v235, %v332
    %v501 = vsub.f32 %v237, %v332
    %v502 = vsub.f32 %v239, %v333
    %v503 = vsub.f32 %v241, %v333
    %v504 = vsub.f32 %v245, %v334
    %v505 = vsub.f32 %v247, %v334
    %v506 = vsub.f32 %v249, %v335
    %v507 = vsub.f32 %v251, %v335
    %v508 = vsub.f32 %v255, %v336
    %v509 = vsub.f32 %v257, %v336
    %v510 = vsub.f32 %v259, %v337
    %v511 = vsub.f32 %v261, %v337
    %v512 = vsub.f32 %v265, %v338
    %v513 = vsub.f32 %v267, %v338
    %v514 = vsub.f32 %v269, %v339
    %v515 = vsub.f32 %v271, %v339
    %v516 = vadd.f32 %v468, 1e-05
    %v517 = vadd.f32 %v469, 1e-05
    %v518 = vadd.f32 %v470, 1e-05
    %v519 = vadd.f32 %v471, 1e-05
    %v520 = vadd.f32 %v472, 1e-05
    %v521 = vadd.f32 %v473, 1e-05
    %v522 = vadd.f32 %v474, 1e-05
    %v523 = vadd.f32 %v475, 1e-05
    %v524 = vadd.f32 %v476, 1e-05
    %v525 = vadd.f32 %v477, 1e-05
    %v526 = vadd.f32 %v478, 1e-05
    %v527 = vadd.f32 %v479, 1e-05
    %v528 = vadd.f32 %v480, 1e-05
    %v529 = vadd.f32 %v481, 1e-05
    %v530 = vadd.f32 %v482, 1e-05
    %v531 = vadd.f32 %v483, 1e-05
    %v532 = vrsqrt.pop %v516
    %v533 = vrsqrt.pop %v517
    %v534 = vrsqrt.pop %v518
    %v535 = vrsqrt.pop %v519
    %v536 = vrsqrt.pop %v520
    %v537 = vrsqrt.pop %v521
    %v538 = vrsqrt.pop %v522
    %v539 = vrsqrt.pop %v523
    %v540 = vrsqrt.pop %v524
    %v541 = vrsqrt.pop %v525
    %v542 = vrsqrt.pop %v526
    %v543 = vrsqrt.pop %v527
    %v544 = vrsqrt.pop %v528
    %v545 = vrsqrt.pop %v529
    %v546 = vrsqrt.pop %v530
    %v547 = vrsqrt.pop %v531
    %v548 = vmul.f32 %v484, %v532
    %v549 = vmul.f32 %v485, %v532
    %v550 = vmul.f32 %v486, %v533
    %v551 = vmul.f32 %v487, %v533
    %v552 = vmul.f32 %v488, %v534
    %v553 = vmul.f32 %v489, %v534
    %v554 = vmul.f32 %v490, %v535
    %v555 = vmul.f32 %v491, %v535
    %v556 = vmul.f32 %v492, %v536
    %v557 = vmul.f32 %v493, %v536
    %v558 = vmul.f32 %v494, %v537
    %v559 = vmul.f32 %v495, %v537
    %v560 = vmul.f32 %v496, %v538
    %v561 = vmul.f32 %v497, %v538
    %v562 = vmul.f32 %v498, %v539
    %v563 = vmul.f32 %v499, %v539
    %v564 = vmul.f32 %v500, %v540
    %v565 = vmul.f32 %v501, %v540
    %v566 = vmul.f32 %v502, %v541
    %v567 = vmul.f32 %v503, %v541
    %v568 = vmul.f32 %v504, %v542
    %v569 = vmul.f32 %v505, %v542
    %v570 = vmul.f32 %v506, %v543
    %v571 = vmul.f32 %v507, %v543
    %v572 = vmul.f32 %v508, %v544
    %v573 = vmul.f32 %v509, %v544
    %v574 = vmul.f32 %v510, %v545
    %v575 = vmul.f32 %v511, %v545
    %v576 = vmul.f32 %v512, %v546
    %v577 = vmul.f32 %v513, %v546
    %v578 = vmul.f32 %v514, %v547
    %v579 = vmul.f32 %v515, %v547
    %v581 = vlaneseq
    %v582 = vshrl.u32 %v581, 7
    %v583 = vsub.s32 0, %v582
    %v584 = vrot.slane %v273, %v583
    %v585 = vlaneseq
    %v586 = vshrl.u32 %v585, 7
    %v587 = vsub.s32 1, %v586
    %v588 = vrot.slane %v273, %v587
    %v591 = vmul.f32 %v548, %v584
    %v592 = vmul.f32 %v549, %v588
    %v593 = vmul.f32 %v550, %v584
    %v594 = vmul.f32 %v551, %v588
    %v595 = vmul.f32 %v552, %v584
    %v596 = vmul.f32 %v553, %v588
    %v597 = vmul.f32 %v554, %v584
    %v598 = vmul.f32 %v555, %v588
    %v599 = vmul.f32 %v556, %v584
    %v600 = vmul.f32 %v557, %v588
    %v601 = vmul.f32 %v558, %v584
    %v602 = vmul.f32 %v559, %v588
    %v603 = vmul.f32 %v560, %v584
    %v604 = vmul.f32 %v561, %v588
    %v605 = vmul.f32 %v562, %v584
    %v606 = vmul.f32 %v563, %v588
    %v607 = vmul.f32 %v564, %v584
    %v608 = vmul.f32 %v565, %v588
    %v609 = vmul.f32 %v566, %v584
    %v610 = vmul.f32 %v567, %v588
    %v611 = vmul.f32 %v568, %v584
    %v612 = vmul.f32 %v569, %v588
    %v613 = vmul.f32 %v570, %v584
    %v614 = vmul.f32 %v571, %v588
    %v615 = vmul.f32 %v572, %v584
    %v616 = vmul.f32 %v573, %v588
    %v617 = vmul.f32 %v574, %v584
    %v618 = vmul.f32 %v575, %v588
    %v619 = vmul.f32 %v576, %v584
    %v620 = vmul.f32 %v577, %v588
    %v621 = vmul.f32 %v578, %v584
    %v622 = vmul.f32 %v579, %v588
    %v624 = vlaneseq
    %v625 = vshrl.u32 %v624, 7
    %v626 = vsub.s32 0, %v625
    %v627 = vrot.slane %v274, %v626
    %v628 = vlaneseq
    %v629 = vshrl.u32 %v628, 7
    %v630 = vsub.s32 1, %v629
    %v631 = vrot.slane %v274, %v630
    %v634 = vadd.f32 %v591, %v627
    %v635 = vadd.f32 %v592, %v631
    %v636 = vadd.f32 %v593, %v627
    %v637 = vadd.f32 %v594, %v631
    %v638 = vadd.f32 %v595, %v627
    %v639 = vadd.f32 %v596, %v631
    %v640 = vadd.f32 %v597, %v627
    %v641 = vadd.f32 %v598, %v631
    %v642 = vadd.f32 %v599, %v627
    %v643 = vadd.f32 %v600, %v631
    %v644 = vadd.f32 %v601, %v627
    %v645 = vadd.f32 %v602, %v631
    %v646 = vadd.f32 %v603, %v627
    %v647 = vadd.f32 %v604, %v631
    %v648 = vadd.f32 %v605, %v627
    %v649 = vadd.f32 %v606, %v631
    %v650 = vadd.f32 %v607, %v627
    %v651 = vadd.f32 %v608, %v631
    %v652 = vadd.f32 %v609, %v627
    %v653 = vadd.f32 %v610, %v631
    %v654 = vadd.f32 %v611, %v627
    %v655 = vadd.f32 %v612, %v631
    %v656 = vadd.f32 %v613, %v627
    %v657 = vadd.f32 %v614, %v631
    %v658 = vadd.f32 %v615, %v627
    %v659 = vadd.f32 %v616, %v631
    %v660 = vadd.f32 %v617, %v627
    %v661 = vadd.f32 %v618, %v631
    %v662 = vadd.f32 %v619, %v627
    %v663 = vadd.f32 %v620, %v631
    %v664 = vadd.f32 %v621, %v627
    %v665 = vadd.f32 %v622, %v631
    %v666 = vmax.f32 %v634, 0.0
    %v667 = vmax.f32 %v635, 0.0
    %v668 = vmax.f32 %v636, 0.0
    %v669 = vmax.f32 %v637, 0.0
    %v670 = vmax.f32 %v638, 0.0
    %v671 = vmax.f32 %v639, 0.0
    %v672 = vmax.f32 %v640, 0.0
    %v673 = vmax.f32 %v641, 0.0
    %v674 = vmax.f32 %v642, 0.0
    %v675 = vmax.f32 %v643, 0.0
    %v676 = vmax.f32 %v644, 0.0
    %v677 = vmax.f32 %v645, 0.0
    %v678 = vmax.f32 %v646, 0.0
    %v679 = vmax.f32 %v647, 0.0
    %v680 = vmax.f32 %v648, 0.0
    %v681 = vmax.f32 %v649, 0.0
    %v682 = vmax.f32 %v650, 0.0
    %v683 = vmax.f32 %v651, 0.0
    %v684 = vmax.f32 %v652, 0.0
    %v685 = vmax.f32 %v653, 0.0
    %v686 = vmax.f32 %v654, 0.0
    %v687 = vmax.f32 %v655, 0.0
    %v688 = vmax.f32 %v656, 0.0
    %v689 = vmax.f32 %v657, 0.0
    %v690 = vmax.f32 %v658, 0.0
    %v691 = vmax.f32 %v659, 0.0
    %v692 = vmax.f32 %v660, 0.0
    %v693 = vmax.f32 %v661, 0.0
    %v694 = vmax.f32 %v662, 0.0
    %v695 = vmax.f32 %v663, 0.0
    %v696 = vmax.f32 %v664, 0.0
    %v697 = vmax.f32 %v665, 0.0
    %v698 = vpack.c.bf16 %v668, %v666
    %v699 = vpack.c.bf16 %v669, %v667
    %v700 = vpack.c.bf16 %v672, %v670
    %v701 = vpack.c.bf16 %v673, %v671
    %v702 = vpack.c.bf16 %v676, %v674
    %v703 = vpack.c.bf16 %v677, %v675
    %v704 = vpack.c.bf16 %v680, %v678
    %v705 = vpack.c.bf16 %v681, %v679
    %v706 = vpack.c.bf16 %v684, %v682
    %v707 = vpack.c.bf16 %v685, %v683
    %v708 = vpack.c.bf16 %v688, %v686
    %v709 = vpack.c.bf16 %v689, %v687
    %v710 = vpack.c.bf16 %v692, %v690
    %v711 = vpack.c.bf16 %v693, %v691
    %v712 = vpack.c.bf16 %v696, %v694
    %v713 = vpack.c.bf16 %v697, %v695
    %v714 = vld [vmem:[#allocation3] sm:$0xff]
    %v715 = vld [vmem:[#allocation3 + $0x8] sm:$0xff]
    %v716 = vld [vmem:[#allocation3 + $0x10] sm:$0xff]
    %v717 = vld [vmem:[#allocation3 + $0x18] sm:$0xff]
    %v718 = vld [vmem:[#allocation3 + $0x20] sm:$0xff]
    %v719 = vld [vmem:[#allocation3 + $0x28] sm:$0xff]
    %v720 = vld [vmem:[#allocation3 + $0x30] sm:$0xff]
    %v721 = vld [vmem:[#allocation3 + $0x38] sm:$0xff]
    %v722 = vld [vmem:[#allocation3 + $0x40] sm:$0xff]
    %v723 = vld [vmem:[#allocation3 + $0x48] sm:$0xff]
    %v724 = vld [vmem:[#allocation3 + $0x50] sm:$0xff]
    %v725 = vld [vmem:[#allocation3 + $0x58] sm:$0xff]
    %v726 = vld [vmem:[#allocation3 + $0x60] sm:$0xff]
    %v727 = vld [vmem:[#allocation3 + $0x68] sm:$0xff]
    %v728 = vld [vmem:[#allocation3 + $0x70] sm:$0xff]
    %v729 = vld [vmem:[#allocation3 + $0x78] sm:$0xff]
    %v730 = vld [vmem:[#allocation3 + $0x80] sm:$0xff]
    %v731 = vld [vmem:[#allocation3 + $0x88] sm:$0xff]
    %v732 = vld [vmem:[#allocation3 + $0x90] sm:$0xff]
    %v733 = vld [vmem:[#allocation3 + $0x98] sm:$0xff]
    %v734 = vld [vmem:[#allocation3 + $0xa0] sm:$0xff]
    %v735 = vld [vmem:[#allocation3 + $0xa8] sm:$0xff]
    %v736 = vld [vmem:[#allocation3 + $0xb0] sm:$0xff]
    %v737 = vld [vmem:[#allocation3 + $0xb8] sm:$0xff]
    %v738 = vld [vmem:[#allocation3 + $0xc0] sm:$0xff]
    %v739 = vld [vmem:[#allocation3 + $0xc8] sm:$0xff]
    %v740 = vld [vmem:[#allocation3 + $0xd0] sm:$0xff]
    %v741 = vld [vmem:[#allocation3 + $0xd8] sm:$0xff]
    %v742 = vld [vmem:[#allocation3 + $0xe0] sm:$0xff]
    %v743 = vld [vmem:[#allocation3 + $0xe8] sm:$0xff]
    %v744 = vld [vmem:[#allocation3 + $0xf0] sm:$0xff]
    %v745 = vld [vmem:[#allocation3 + $0xf8] sm:$0xff]
    %v746 = vld [vmem:[%s6] sm:$0x3]
    %v748 = vlaneseq
    %v749 = vshrl.u32 %v748, 7
    %v750 = vsub.s32 0, %v749
    %v751 = vrot.slane %v746, %v750
    %v752 = vlaneseq
    %v753 = vshrl.u32 %v752, 7
    %v754 = vsub.s32 1, %v753
    %v755 = vrot.slane %v746, %v754
    %v790 = vunpack.c.l.b16 %v714
    %v791 = vunpack.c.h.b16 %v714
    %v792 = vunpack.c.l.b16 %v715
    %v793 = vunpack.c.h.b16 %v715
    %v794 = vunpack.c.l.b16 %v716
    %v795 = vunpack.c.h.b16 %v716
    %v796 = vunpack.c.l.b16 %v717
    %v797 = vunpack.c.h.b16 %v717
    %v798 = vunpack.c.l.b16 %v718
    %v799 = vunpack.c.h.b16 %v718
    %v800 = vunpack.c.l.b16 %v719
    %v801 = vunpack.c.h.b16 %v719
    %v802 = vunpack.c.l.b16 %v720
    %v803 = vunpack.c.h.b16 %v720
    %v804 = vunpack.c.l.b16 %v721
    %v805 = vunpack.c.h.b16 %v721
    %v806 = vunpack.c.l.b16 %v722
    %v807 = vunpack.c.h.b16 %v722
    %v808 = vunpack.c.l.b16 %v723
    %v809 = vunpack.c.h.b16 %v723
    %v810 = vunpack.c.l.b16 %v724
    %v811 = vunpack.c.h.b16 %v724
    %v812 = vunpack.c.l.b16 %v725
    %v813 = vunpack.c.h.b16 %v725
    %v814 = vunpack.c.l.b16 %v726
    %v815 = vunpack.c.h.b16 %v726
    %v816 = vunpack.c.l.b16 %v727
    %v817 = vunpack.c.h.b16 %v727
    %v818 = vunpack.c.l.b16 %v728
    %v819 = vunpack.c.h.b16 %v728
    %v820 = vunpack.c.l.b16 %v729
    %v821 = vunpack.c.h.b16 %v729
    %v822 = vunpack.c.l.b16 %v730
    %v823 = vunpack.c.h.b16 %v730
    %v824 = vunpack.c.l.b16 %v731
    %v825 = vunpack.c.h.b16 %v731
    %v826 = vunpack.c.l.b16 %v732
    %v827 = vunpack.c.h.b16 %v732
    %v828 = vunpack.c.l.b16 %v733
    %v829 = vunpack.c.h.b16 %v733
    %v830 = vunpack.c.l.b16 %v734
    %v831 = vunpack.c.h.b16 %v734
    %v832 = vunpack.c.l.b16 %v735
    %v833 = vunpack.c.h.b16 %v735
    %v834 = vunpack.c.l.b16 %v736
    %v835 = vunpack.c.h.b16 %v736
    %v836 = vunpack.c.l.b16 %v737
    %v837 = vunpack.c.h.b16 %v737
    %v838 = vunpack.c.l.b16 %v738
    %v839 = vunpack.c.h.b16 %v738
    %v840 = vunpack.c.l.b16 %v739
    %v841 = vunpack.c.h.b16 %v739
    %v842 = vunpack.c.l.b16 %v740
    %v843 = vunpack.c.h.b16 %v740
    %v844 = vunpack.c.l.b16 %v741
    %v845 = vunpack.c.h.b16 %v741
    %v846 = vunpack.c.l.b16 %v742
    %v847 = vunpack.c.h.b16 %v742
    %v848 = vunpack.c.l.b16 %v743
    %v849 = vunpack.c.h.b16 %v743
    %v850 = vunpack.c.l.b16 %v744
    %v851 = vunpack.c.h.b16 %v744
    %v852 = vunpack.c.l.b16 %v745
    %v853 = vunpack.c.h.b16 %v745
    %v854 = vpack.c.b16 %v792, %v790
    %v855 = vpack.c.b16 %v793, %v791
    %v856 = vpack.c.b16 %v796, %v794
    %v857 = vpack.c.b16 %v797, %v795
    %v858 = vpack.c.b16 %v800, %v798
    %v859 = vpack.c.b16 %v801, %v799
    %v860 = vpack.c.b16 %v804, %v802
    %v861 = vpack.c.b16 %v805, %v803
    %v862 = vpack.c.b16 %v808, %v806
    %v863 = vpack.c.b16 %v809, %v807
    %v864 = vpack.c.b16 %v812, %v810
    %v865 = vpack.c.b16 %v813, %v811
    %v866 = vpack.c.b16 %v816, %v814
    %v867 = vpack.c.b16 %v817, %v815
    %v868 = vpack.c.b16 %v820, %v818
    %v869 = vpack.c.b16 %v821, %v819
    %v870 = vpack.c.b16 %v824, %v822
    %v871 = vpack.c.b16 %v825, %v823
    %v872 = vpack.c.b16 %v828, %v826
    %v873 = vpack.c.b16 %v829, %v827
    %v874 = vpack.c.b16 %v832, %v830
    %v875 = vpack.c.b16 %v833, %v831
    %v876 = vpack.c.b16 %v836, %v834
    %v877 = vpack.c.b16 %v837, %v835
    %v878 = vpack.c.b16 %v840, %v838
    %v879 = vpack.c.b16 %v841, %v839
    %v880 = vpack.c.b16 %v844, %v842
    %v881 = vpack.c.b16 %v845, %v843
    %v882 = vpack.c.b16 %v848, %v846
    %v883 = vpack.c.b16 %v849, %v847
    %v884 = vpack.c.b16 %v852, %v850
    %v885 = vpack.c.b16 %v853, %v851
    %918 = vmatprep.subr.bf16.mxu0 %v869
    %919 = vmatpush1.bf16.msra.mxu0 %v868
    %920 = vmatprep.subr.bf16.mxu0 %v867
    %921 = vmatpush1.bf16.msra.mxu0 %v866
    %922 = vmatprep.subr.bf16.mxu0 %v865
    %923 = vmatpush1.bf16.msra.mxu0 %v864
    %924 = vmatprep.subr.bf16.mxu0 %v863
    %925 = vmatpush1.bf16.msra.mxu0 %v862
    %926 = vmatprep.subr.bf16.mxu0 %v861
    %927 = vmatpush1.bf16.msra.mxu0 %v860
    %928 = vmatprep.subr.bf16.mxu0 %v859
    %929 = vmatpush1.bf16.msra.mxu0 %v858
    %930 = vmatprep.subr.bf16.mxu0 %v857
    %931 = vmatpush1.bf16.msra.mxu0 %v856
    %932 = vmatprep.subr.bf16.mxu0 %v855
    %933 = vmatpush1.bf16.msra.mxu0 %v854
    %934 = vmatprep.subr.bf16.mxu0 %v885
    %935 = vmatpush2.bf16.msra.mxu0 %v884
    %936 = vmatprep.subr.bf16.mxu0 %v883
    %937 = vmatpush2.bf16.msra.mxu0 %v882
    %938 = vmatprep.subr.bf16.mxu0 %v881
    %939 = vmatpush2.bf16.msra.mxu0 %v880
    %940 = vmatprep.subr.bf16.mxu0 %v879
    %941 = vmatpush2.bf16.msra.mxu0 %v878
    %942 = vmatprep.subr.bf16.mxu0 %v877
    %943 = vmatpush2.bf16.msra.mxu0 %v876
    %944 = vmatprep.subr.bf16.mxu0 %v875
    %945 = vmatpush2.bf16.msra.mxu0 %v874
    %946 = vmatprep.subr.bf16.mxu0 %v873
    %947 = vmatpush2.bf16.msra.mxu0 %v872
    %948 = vmatprep.subr.bf16.mxu0 %v871
    %949 = vmatpush2.bf16.msra.mxu0 %v870
    %950 = vmatprep.mubr.bf16.mxu0 %v699
    %951 = vmatmul.mubr.bf16.gmra.mxu0 %v698
    %v952 = vpop.f32.mrf.mxu0
    %v953 = vadd.f32 %v751, %v952
    %v954 = vpop.f32.mrf.mxu0
    %v955 = vadd.f32 %v755, %v954
    %v956 = vpop.f32.mrf.mxu0
    %v957 = vadd.f32 %v751, %v956
    %v958 = vpop.f32.mrf.mxu0
    %v959 = vadd.f32 %v755, %v958
    %960 = vmatprep.mubr.bf16.mxu0 %v701
    %961 = vmatmul.mubr.bf16.gmra.mxu0 %v700
    %v962 = vpop.f32.mrf.mxu0
    %v963 = vadd.f32 %v751, %v962
    %v964 = vpop.f32.mrf.mxu0
    %v965 = vadd.f32 %v755, %v964
    %v966 = vpop.f32.mrf.mxu0
    %v967 = vadd.f32 %v751, %v966
    %v968 = vpop.f32.mrf.mxu0
    %v969 = vadd.f32 %v755, %v968
    %970 = vmatprep.mubr.bf16.mxu0 %v703
    %971 = vmatmul.mubr.bf16.gmra.mxu0 %v702
    %v972 = vpop.f32.mrf.mxu0
    %v973 = vadd.f32 %v751, %v972
    %v974 = vpop.f32.mrf.mxu0
    %v975 = vadd.f32 %v755, %v974
    %v976 = vpop.f32.mrf.mxu0
    %v977 = vadd.f32 %v751, %v976
    %v978 = vpop.f32.mrf.mxu0
    %v979 = vadd.f32 %v755, %v978
    %980 = vmatprep.mubr.bf16.mxu0 %v705
    %981 = vmatmul.mubr.bf16.gmra.mxu0 %v704
    %v982 = vpop.f32.mrf.mxu0
    %v983 = vadd.f32 %v751, %v982
    %v984 = vpop.f32.mrf.mxu0
    %v985 = vadd.f32 %v755, %v984
    %v986 = vpop.f32.mrf.mxu0
    %v987 = vadd.f32 %v751, %v986
    %v988 = vpop.f32.mrf.mxu0
    %v989 = vadd.f32 %v755, %v988
    %990 = vmatprep.mubr.bf16.mxu0 %v707
    %991 = vmatmul.mubr.bf16.gmra.mxu0 %v706
    %v992 = vpop.f32.mrf.mxu0
    %v993 = vadd.f32 %v751, %v992
    %v994 = vpop.f32.mrf.mxu0
    %v995 = vadd.f32 %v755, %v994
    %v996 = vpop.f32.mrf.mxu0
    %v997 = vadd.f32 %v751, %v996
    %v998 = vpop.f32.mrf.mxu0
    %v999 = vadd.f32 %v755, %v998
    %1000 = vmatprep.mubr.bf16.mxu0 %v709
    %1001 = vmatmul.mubr.bf16.gmra.mxu0 %v708
    %v1002 = vpop.f32.mrf.mxu0
    %v1003 = vadd.f32 %v751, %v1002
    %v1004 = vpop.f32.mrf.mxu0
    %v1005 = vadd.f32 %v755, %v1004
    %v1006 = vpop.f32.mrf.mxu0
    %v1007 = vadd.f32 %v751, %v1006
    %v1008 = vpop.f32.mrf.mxu0
    %v1009 = vadd.f32 %v755, %v1008
    %1010 = vmatprep.mubr.bf16.mxu0 %v711
    %1011 = vmatmul.mubr.bf16.gmra.mxu0 %v710
    %v1012 = vpop.f32.mrf.mxu0
    %v1013 = vadd.f32 %v751, %v1012
    %v1014 = vpop.f32.mrf.mxu0
    %v1015 = vadd.f32 %v755, %v1014
    %v1016 = vpop.f32.mrf.mxu0
    %v1017 = vadd.f32 %v751, %v1016
    %v1018 = vpop.f32.mrf.mxu0
    %v1019 = vadd.f32 %v755, %v1018
    %1020 = vmatprep.mubr.bf16.mxu0 %v713
    %1021 = vmatmul.mubr.bf16.gmra.mxu0 %v712
    %v1022 = vpop.f32.mrf.mxu0
    %v1023 = vadd.f32 %v751, %v1022
    %v1024 = vpop.f32.mrf.mxu0
    %v1025 = vadd.f32 %v755, %v1024
    %v1026 = vpop.f32.mrf.mxu0
    %v1027 = vadd.f32 %v751, %v1026
    %v1028 = vpop.f32.mrf.mxu0
    %v1029 = vadd.f32 %v755, %v1028
    %1030 = vdwg.mxu0
    %v1031 = vld [vmem:[%s7] sm:$0x3]
    %v1032 = vld [vmem:[%s8] sm:$0x3]
    %v1033 = vadd.f32 %v953, %v955
    %1034 = vadd.xlane.f32.xlu0 %v1033
    %v1035 = vpop.xlane.xlu0 %1034
    %v1036 = vadd.f32 %v957, %v959
    %1037 = vadd.xlane.f32.xlu0 %v1036
    %v1038 = vpop.xlane.xlu0 %1037
    %v1039 = vadd.f32 %v963, %v965
    %1040 = vadd.xlane.f32.xlu0 %v1039
    %v1041 = vpop.xlane.xlu0 %1040
    %v1042 = vadd.f32 %v967, %v969
    %1043 = vadd.xlane.f32.xlu0 %v1042
    %v1044 = vpop.xlane.xlu0 %1043
    %v1045 = vadd.f32 %v973, %v975
    %1046 = vadd.xlane.f32.xlu0 %v1045
    %v1047 = vpop.xlane.xlu0 %1046
    %v1048 = vadd.f32 %v977, %v979
    %1049 = vadd.xlane.f32.xlu0 %v1048
    %v1050 = vpop.xlane.xlu0 %1049
    %v1051 = vadd.f32 %v983, %v985
    %1052 = vadd.xlane.f32.xlu0 %v1051
    %v1053 = vpop.xlane.xlu0 %1052
    %v1054 = vadd.f32 %v987, %v989
    %1055 = vadd.xlane.f32.xlu0 %v1054
    %v1056 = vpop.xlane.xlu0 %1055
    %v1057 = vadd.f32 %v993, %v995
    %1058 = vadd.xlane.f32.xlu0 %v1057
    %v1059 = vpop.xlane.xlu0 %1058
    %v1060 = vadd.f32 %v997, %v999
    %1061 = vadd.xlane.f32.xlu0 %v1060
    %v1062 = vpop.xlane.xlu0 %1061
    %v1063 = vadd.f32 %v1003, %v1005
    %1064 = vadd.xlane.f32.xlu0 %v1063
    %v1065 = vpop.xlane.xlu0 %1064
    %v1066 = vadd.f32 %v1007, %v1009
    %1067 = vadd.xlane.f32.xlu0 %v1066
    %v1068 = vpop.xlane.xlu0 %1067
    %v1069 = vadd.f32 %v1013, %v1015
    %1070 = vadd.xlane.f32.xlu0 %v1069
    %v1071 = vpop.xlane.xlu0 %1070
    %v1072 = vadd.f32 %v1017, %v1019
    %1073 = vadd.xlane.f32.xlu0 %v1072
    %v1074 = vpop.xlane.xlu0 %1073
    %v1075 = vadd.f32 %v1023, %v1025
    %1076 = vadd.xlane.f32.xlu0 %v1075
    %v1077 = vpop.xlane.xlu0 %1076
    %v1078 = vadd.f32 %v1027, %v1029
    %1079 = vadd.xlane.f32.xlu0 %v1078
    %v1080 = vpop.xlane.xlu0 %1079
    %v1081 = vmul.f32 %v1035, %v323
    %v1082 = vmul.f32 %v1038, %v323
    %v1083 = vmul.f32 %v1041, %v323
    %v1084 = vmul.f32 %v1044, %v323
    %v1085 = vmul.f32 %v1047, %v323
    %v1086 = vmul.f32 %v1050, %v323
    %v1087 = vmul.f32 %v1053, %v323
    %v1088 = vmul.f32 %v1056, %v323
    %v1089 = vmul.f32 %v1059, %v323
    %v1090 = vmul.f32 %v1062, %v323
    %v1091 = vmul.f32 %v1065, %v323
    %v1092 = vmul.f32 %v1068, %v323
    %v1093 = vmul.f32 %v1071, %v323
    %v1094 = vmul.f32 %v1074, %v323
    %v1095 = vmul.f32 %v1077, %v323
    %v1096 = vmul.f32 %v1080, %v323
    %v1097 = vmul.f32 %v953, %v953
    %v1098 = vmul.f32 %v955, %v955
    %v1099 = vmul.f32 %v957, %v957
    %v1100 = vmul.f32 %v959, %v959
    %v1101 = vmul.f32 %v963, %v963
    %v1102 = vmul.f32 %v965, %v965
    %v1103 = vmul.f32 %v967, %v967
    %v1104 = vmul.f32 %v969, %v969
    %v1105 = vmul.f32 %v973, %v973
    %v1106 = vmul.f32 %v975, %v975
    %v1107 = vmul.f32 %v977, %v977
    %v1108 = vmul.f32 %v979, %v979
    %v1109 = vmul.f32 %v983, %v983
    %v1110 = vmul.f32 %v985, %v985
    %v1111 = vmul.f32 %v987, %v987
    %v1112 = vmul.f32 %v989, %v989
    %v1113 = vmul.f32 %v993, %v993
    %v1114 = vmul.f32 %v995, %v995
    %v1115 = vmul.f32 %v997, %v997
    %v1116 = vmul.f32 %v999, %v999
    %v1117 = vmul.f32 %v1003, %v1003
    %v1118 = vmul.f32 %v1005, %v1005
    %v1119 = vmul.f32 %v1007, %v1007
    %v1120 = vmul.f32 %v1009, %v1009
    %v1121 = vmul.f32 %v1013, %v1013
    %v1122 = vmul.f32 %v1015, %v1015
    %v1123 = vmul.f32 %v1017, %v1017
    %v1124 = vmul.f32 %v1019, %v1019
    %v1125 = vmul.f32 %v1023, %v1023
    %v1126 = vmul.f32 %v1025, %v1025
    %v1127 = vmul.f32 %v1027, %v1027
    %v1128 = vmul.f32 %v1029, %v1029
    %v1129 = vadd.f32 %v1097, %v1098
    %1130 = vadd.xlane.f32.xlu0 %v1129
    %v1131 = vpop.xlane.xlu0 %1130
    %v1132 = vadd.f32 %v1099, %v1100
    %1133 = vadd.xlane.f32.xlu0 %v1132
    %v1134 = vpop.xlane.xlu0 %1133
    %v1135 = vadd.f32 %v1101, %v1102
    %1136 = vadd.xlane.f32.xlu0 %v1135
    %v1137 = vpop.xlane.xlu0 %1136
    %v1138 = vadd.f32 %v1103, %v1104
    %1139 = vadd.xlane.f32.xlu0 %v1138
    %v1140 = vpop.xlane.xlu0 %1139
    %v1141 = vadd.f32 %v1105, %v1106
    %1142 = vadd.xlane.f32.xlu0 %v1141
    %v1143 = vpop.xlane.xlu0 %1142
    %v1144 = vadd.f32 %v1107, %v1108
    %1145 = vadd.xlane.f32.xlu0 %v1144
    %v1146 = vpop.xlane.xlu0 %1145
    %v1147 = vadd.f32 %v1109, %v1110
    %1148 = vadd.xlane.f32.xlu0 %v1147
    %v1149 = vpop.xlane.xlu0 %1148
    %v1150 = vadd.f32 %v1111, %v1112
    %1151 = vadd.xlane.f32.xlu0 %v1150
    %v1152 = vpop.xlane.xlu0 %1151
    %v1153 = vadd.f32 %v1113, %v1114
    %1154 = vadd.xlane.f32.xlu0 %v1153
    %v1155 = vpop.xlane.xlu0 %1154
    %v1156 = vadd.f32 %v1115, %v1116
    %1157 = vadd.xlane.f32.xlu0 %v1156
    %v1158 = vpop.xlane.xlu0 %1157
    %v1159 = vadd.f32 %v1117, %v1118
    %1160 = vadd.xlane.f32.xlu0 %v1159
    %v1161 = vpop.xlane.xlu0 %1160
    %v1162 = vadd.f32 %v1119, %v1120
    %1163 = vadd.xlane.f32.xlu0 %v1162
    %v1164 = vpop.xlane.xlu0 %1163
    %v1165 = vadd.f32 %v1121, %v1122
    %1166 = vadd.xlane.f32.xlu0 %v1165
    %v1167 = vpop.xlane.xlu0 %1166
    %v1168 = vadd.f32 %v1123, %v1124
    %1169 = vadd.xlane.f32.xlu0 %v1168
    %v1170 = vpop.xlane.xlu0 %1169
    %v1171 = vadd.f32 %v1125, %v1126
    %1172 = vadd.xlane.f32.xlu0 %v1171
    %v1173 = vpop.xlane.xlu0 %1172
    %v1174 = vadd.f32 %v1127, %v1128
    %1175 = vadd.xlane.f32.xlu0 %v1174
    %v1176 = vpop.xlane.xlu0 %1175
    %v1177 = vmul.f32 %v1131, %v323
    %v1178 = vmul.f32 %v1134, %v323
    %v1179 = vmul.f32 %v1137, %v323
    %v1180 = vmul.f32 %v1140, %v323
    %v1181 = vmul.f32 %v1143, %v323
    %v1182 = vmul.f32 %v1146, %v323
    %v1183 = vmul.f32 %v1149, %v323
    %v1184 = vmul.f32 %v1152, %v323
    %v1185 = vmul.f32 %v1155, %v323
    %v1186 = vmul.f32 %v1158, %v323
    %v1187 = vmul.f32 %v1161, %v323
    %v1188 = vmul.f32 %v1164, %v323
    %v1189 = vmul.f32 %v1167, %v323
    %v1190 = vmul.f32 %v1170, %v323
    %v1191 = vmul.f32 %v1173, %v323
    %v1192 = vmul.f32 %v1176, %v323
    %v1193 = vmul.f32 %v1081, %v1081
    %v1194 = vmul.f32 %v1082, %v1082
    %v1195 = vmul.f32 %v1083, %v1083
    %v1196 = vmul.f32 %v1084, %v1084
    %v1197 = vmul.f32 %v1085, %v1085
    %v1198 = vmul.f32 %v1086, %v1086
    %v1199 = vmul.f32 %v1087, %v1087
    %v1200 = vmul.f32 %v1088, %v1088
    %v1201 = vmul.f32 %v1089, %v1089
    %v1202 = vmul.f32 %v1090, %v1090
    %v1203 = vmul.f32 %v1091, %v1091
    %v1204 = vmul.f32 %v1092, %v1092
    %v1205 = vmul.f32 %v1093, %v1093
    %v1206 = vmul.f32 %v1094, %v1094
    %v1207 = vmul.f32 %v1095, %v1095
    %v1208 = vmul.f32 %v1096, %v1096
    %v1209 = vsub.f32 %v1177, %v1193
    %v1210 = vsub.f32 %v1178, %v1194
    %v1211 = vsub.f32 %v1179, %v1195
    %v1212 = vsub.f32 %v1180, %v1196
    %v1213 = vsub.f32 %v1181, %v1197
    %v1214 = vsub.f32 %v1182, %v1198
    %v1215 = vsub.f32 %v1183, %v1199
    %v1216 = vsub.f32 %v1184, %v1200
    %v1217 = vsub.f32 %v1185, %v1201
    %v1218 = vsub.f32 %v1186, %v1202
    %v1219 = vsub.f32 %v1187, %v1203
    %v1220 = vsub.f32 %v1188, %v1204
    %v1221 = vsub.f32 %v1189, %v1205
    %v1222 = vsub.f32 %v1190, %v1206
    %v1223 = vsub.f32 %v1191, %v1207
    %v1224 = vsub.f32 %v1192, %v1208
    %v1225 = vmax.f32 %v1209, 0.0
    %v1226 = vmax.f32 %v1210, 0.0
    %v1227 = vmax.f32 %v1211, 0.0
    %v1228 = vmax.f32 %v1212, 0.0
    %v1229 = vmax.f32 %v1213, 0.0
    %v1230 = vmax.f32 %v1214, 0.0
    %v1231 = vmax.f32 %v1215, 0.0
    %v1232 = vmax.f32 %v1216, 0.0
    %v1233 = vmax.f32 %v1217, 0.0
    %v1234 = vmax.f32 %v1218, 0.0
    %v1235 = vmax.f32 %v1219, 0.0
    %v1236 = vmax.f32 %v1220, 0.0
    %v1237 = vmax.f32 %v1221, 0.0
    %v1238 = vmax.f32 %v1222, 0.0
    %v1239 = vmax.f32 %v1223, 0.0
    %v1240 = vmax.f32 %v1224, 0.0
    %v1241 = vsub.f32 %v953, %v1081
    %v1242 = vsub.f32 %v955, %v1081
    %v1243 = vsub.f32 %v957, %v1082
    %v1244 = vsub.f32 %v959, %v1082
    %v1245 = vsub.f32 %v963, %v1083
    %v1246 = vsub.f32 %v965, %v1083
    %v1247 = vsub.f32 %v967, %v1084
    %v1248 = vsub.f32 %v969, %v1084
    %v1249 = vsub.f32 %v973, %v1085
    %v1250 = vsub.f32 %v975, %v1085
    %v1251 = vsub.f32 %v977, %v1086
    %v1252 = vsub.f32 %v979, %v1086
    %v1253 = vsub.f32 %v983, %v1087
    %v1254 = vsub.f32 %v985, %v1087
    %v1255 = vsub.f32 %v987, %v1088
    %v1256 = vsub.f32 %v989, %v1088
    %v1257 = vsub.f32 %v993, %v1089
    %v1258 = vsub.f32 %v995, %v1089
    %v1259 = vsub.f32 %v997, %v1090
    %v1260 = vsub.f32 %v999, %v1090
    %v1261 = vsub.f32 %v1003, %v1091
    %v1262 = vsub.f32 %v1005, %v1091
    %v1263 = vsub.f32 %v1007, %v1092
    %v1264 = vsub.f32 %v1009, %v1092
    %v1265 = vsub.f32 %v1013, %v1093
    %v1266 = vsub.f32 %v1015, %v1093
    %v1267 = vsub.f32 %v1017, %v1094
    %v1268 = vsub.f32 %v1019, %v1094
    %v1269 = vsub.f32 %v1023, %v1095
    %v1270 = vsub.f32 %v1025, %v1095
    %v1271 = vsub.f32 %v1027, %v1096
    %v1272 = vsub.f32 %v1029, %v1096
    %v1273 = vadd.f32 %v1225, 1e-05
    %v1274 = vadd.f32 %v1226, 1e-05
    %v1275 = vadd.f32 %v1227, 1e-05
    %v1276 = vadd.f32 %v1228, 1e-05
    %v1277 = vadd.f32 %v1229, 1e-05
    %v1278 = vadd.f32 %v1230, 1e-05
    %v1279 = vadd.f32 %v1231, 1e-05
    %v1280 = vadd.f32 %v1232, 1e-05
    %v1281 = vadd.f32 %v1233, 1e-05
    %v1282 = vadd.f32 %v1234, 1e-05
    %v1283 = vadd.f32 %v1235, 1e-05
    %v1284 = vadd.f32 %v1236, 1e-05
    %v1285 = vadd.f32 %v1237, 1e-05
    %v1286 = vadd.f32 %v1238, 1e-05
    %v1287 = vadd.f32 %v1239, 1e-05
    %v1288 = vadd.f32 %v1240, 1e-05
    %v1289 = vrsqrt.pop %v1273
    %v1290 = vrsqrt.pop %v1274
    %v1291 = vrsqrt.pop %v1275
    %v1292 = vrsqrt.pop %v1276
    %v1293 = vrsqrt.pop %v1277
    %v1294 = vrsqrt.pop %v1278
    %v1295 = vrsqrt.pop %v1279
    %v1296 = vrsqrt.pop %v1280
    %v1297 = vrsqrt.pop %v1281
    %v1298 = vrsqrt.pop %v1282
    %v1299 = vrsqrt.pop %v1283
    %v1300 = vrsqrt.pop %v1284
    %v1301 = vrsqrt.pop %v1285
    %v1302 = vrsqrt.pop %v1286
    %v1303 = vrsqrt.pop %v1287
    %v1304 = vrsqrt.pop %v1288
    %v1305 = vmul.f32 %v1241, %v1289
    %v1306 = vmul.f32 %v1242, %v1289
    %v1307 = vmul.f32 %v1243, %v1290
    %v1308 = vmul.f32 %v1244, %v1290
    %v1309 = vmul.f32 %v1245, %v1291
    %v1310 = vmul.f32 %v1246, %v1291
    %v1311 = vmul.f32 %v1247, %v1292
    %v1312 = vmul.f32 %v1248, %v1292
    %v1313 = vmul.f32 %v1249, %v1293
    %v1314 = vmul.f32 %v1250, %v1293
    %v1315 = vmul.f32 %v1251, %v1294
    %v1316 = vmul.f32 %v1252, %v1294
    %v1317 = vmul.f32 %v1253, %v1295
    %v1318 = vmul.f32 %v1254, %v1295
    %v1319 = vmul.f32 %v1255, %v1296
    %v1320 = vmul.f32 %v1256, %v1296
    %v1321 = vmul.f32 %v1257, %v1297
    %v1322 = vmul.f32 %v1258, %v1297
    %v1323 = vmul.f32 %v1259, %v1298
    %v1324 = vmul.f32 %v1260, %v1298
    %v1325 = vmul.f32 %v1261, %v1299
    %v1326 = vmul.f32 %v1262, %v1299
    %v1327 = vmul.f32 %v1263, %v1300
    %v1328 = vmul.f32 %v1264, %v1300
    %v1329 = vmul.f32 %v1265, %v1301
    %v1330 = vmul.f32 %v1266, %v1301
    %v1331 = vmul.f32 %v1267, %v1302
    %v1332 = vmul.f32 %v1268, %v1302
    %v1333 = vmul.f32 %v1269, %v1303
    %v1334 = vmul.f32 %v1270, %v1303
    %v1335 = vmul.f32 %v1271, %v1304
    %v1336 = vmul.f32 %v1272, %v1304
    %v1338 = vlaneseq
    %v1339 = vshrl.u32 %v1338, 7
    %v1340 = vsub.s32 0, %v1339
    %v1341 = vrot.slane %v1031, %v1340
    %v1342 = vlaneseq
    %v1343 = vshrl.u32 %v1342, 7
    %v1344 = vsub.s32 1, %v1343
    %v1345 = vrot.slane %v1031, %v1344
    %v1348 = vmul.f32 %v1305, %v1341
    %v1349 = vmul.f32 %v1306, %v1345
    %v1350 = vmul.f32 %v1307, %v1341
    %v1351 = vmul.f32 %v1308, %v1345
    %v1352 = vmul.f32 %v1309, %v1341
    %v1353 = vmul.f32 %v1310, %v1345
    %v1354 = vmul.f32 %v1311, %v1341
    %v1355 = vmul.f32 %v1312, %v1345
    %v1356 = vmul.f32 %v1313, %v1341
    %v1357 = vmul.f32 %v1314, %v1345
    %v1358 = vmul.f32 %v1315, %v1341
    %v1359 = vmul.f32 %v1316, %v1345
    %v1360 = vmul.f32 %v1317, %v1341
    %v1361 = vmul.f32 %v1318, %v1345
    %v1362 = vmul.f32 %v1319, %v1341
    %v1363 = vmul.f32 %v1320, %v1345
    %v1364 = vmul.f32 %v1321, %v1341
    %v1365 = vmul.f32 %v1322, %v1345
    %v1366 = vmul.f32 %v1323, %v1341
    %v1367 = vmul.f32 %v1324, %v1345
    %v1368 = vmul.f32 %v1325, %v1341
    %v1369 = vmul.f32 %v1326, %v1345
    %v1370 = vmul.f32 %v1327, %v1341
    %v1371 = vmul.f32 %v1328, %v1345
    %v1372 = vmul.f32 %v1329, %v1341
    %v1373 = vmul.f32 %v1330, %v1345
    %v1374 = vmul.f32 %v1331, %v1341
    %v1375 = vmul.f32 %v1332, %v1345
    %v1376 = vmul.f32 %v1333, %v1341
    %v1377 = vmul.f32 %v1334, %v1345
    %v1378 = vmul.f32 %v1335, %v1341
    %v1379 = vmul.f32 %v1336, %v1345
    %v1381 = vlaneseq
    %v1382 = vshrl.u32 %v1381, 7
    %v1383 = vsub.s32 0, %v1382
    %v1384 = vrot.slane %v1032, %v1383
    %v1385 = vlaneseq
    %v1386 = vshrl.u32 %v1385, 7
    %v1387 = vsub.s32 1, %v1386
    %v1388 = vrot.slane %v1032, %v1387
    %v1391 = vadd.f32 %v1348, %v1384
    %v1392 = vadd.f32 %v1349, %v1388
    %v1393 = vadd.f32 %v1350, %v1384
    %v1394 = vadd.f32 %v1351, %v1388
    %v1395 = vadd.f32 %v1352, %v1384
    %v1396 = vadd.f32 %v1353, %v1388
    %v1397 = vadd.f32 %v1354, %v1384
    %v1398 = vadd.f32 %v1355, %v1388
    %v1399 = vadd.f32 %v1356, %v1384
    %v1400 = vadd.f32 %v1357, %v1388
    %v1401 = vadd.f32 %v1358, %v1384
    %v1402 = vadd.f32 %v1359, %v1388
    %v1403 = vadd.f32 %v1360, %v1384
    %v1404 = vadd.f32 %v1361, %v1388
    %v1405 = vadd.f32 %v1362, %v1384
    %v1406 = vadd.f32 %v1363, %v1388
    %v1407 = vadd.f32 %v1364, %v1384
    %v1408 = vadd.f32 %v1365, %v1388
    %v1409 = vadd.f32 %v1366, %v1384
    %v1410 = vadd.f32 %v1367, %v1388
    %v1411 = vadd.f32 %v1368, %v1384
    %v1412 = vadd.f32 %v1369, %v1388
    %v1413 = vadd.f32 %v1370, %v1384
    %v1414 = vadd.f32 %v1371, %v1388
    %v1415 = vadd.f32 %v1372, %v1384
    %v1416 = vadd.f32 %v1373, %v1388
    %v1417 = vadd.f32 %v1374, %v1384
    %v1418 = vadd.f32 %v1375, %v1388
    %v1419 = vadd.f32 %v1376, %v1384
    %v1420 = vadd.f32 %v1377, %v1388
    %v1421 = vadd.f32 %v1378, %v1384
    %v1422 = vadd.f32 %v1379, %v1388
    %v1423 = vmax.f32 %v1391, 0.0
    %v1424 = vmax.f32 %v1392, 0.0
    %v1425 = vmax.f32 %v1393, 0.0
    %v1426 = vmax.f32 %v1394, 0.0
    %v1427 = vmax.f32 %v1395, 0.0
    %v1428 = vmax.f32 %v1396, 0.0
    %v1429 = vmax.f32 %v1397, 0.0
    %v1430 = vmax.f32 %v1398, 0.0
    %v1431 = vmax.f32 %v1399, 0.0
    %v1432 = vmax.f32 %v1400, 0.0
    %v1433 = vmax.f32 %v1401, 0.0
    %v1434 = vmax.f32 %v1402, 0.0
    %v1435 = vmax.f32 %v1403, 0.0
    %v1436 = vmax.f32 %v1404, 0.0
    %v1437 = vmax.f32 %v1405, 0.0
    %v1438 = vmax.f32 %v1406, 0.0
    %v1439 = vmax.f32 %v1407, 0.0
    %v1440 = vmax.f32 %v1408, 0.0
    %v1441 = vmax.f32 %v1409, 0.0
    %v1442 = vmax.f32 %v1410, 0.0
    %v1443 = vmax.f32 %v1411, 0.0
    %v1444 = vmax.f32 %v1412, 0.0
    %v1445 = vmax.f32 %v1413, 0.0
    %v1446 = vmax.f32 %v1414, 0.0
    %v1447 = vmax.f32 %v1415, 0.0
    %v1448 = vmax.f32 %v1416, 0.0
    %v1449 = vmax.f32 %v1417, 0.0
    %v1450 = vmax.f32 %v1418, 0.0
    %v1451 = vmax.f32 %v1419, 0.0
    %v1452 = vmax.f32 %v1420, 0.0
    %v1453 = vmax.f32 %v1421, 0.0
    %v1454 = vmax.f32 %v1422, 0.0
    %v1455 = vld [vmem:[%s9] sm:$0x3]
    %v1457 = vlaneseq
    %v1458 = vshrl.u32 %v1457, 7
    %v1459 = vsub.s32 0, %v1458
    %v1460 = vrot.slane %v1455, %v1459
    %v1461 = vlaneseq
    %v1462 = vshrl.u32 %v1461, 7
    %v1463 = vsub.s32 1, %v1462
    %v1464 = vrot.slane %v1455, %v1463
    %v1467 = vmul.f32 %v1423, %v1460
    %v1468 = vmul.f32 %v1424, %v1464
    %v1469 = vmul.f32 %v1425, %v1460
    %v1470 = vmul.f32 %v1426, %v1464
    %v1471 = vmul.f32 %v1427, %v1460
    %v1472 = vmul.f32 %v1428, %v1464
    %v1473 = vmul.f32 %v1429, %v1460
    %v1474 = vmul.f32 %v1430, %v1464
    %v1475 = vmul.f32 %v1431, %v1460
    %v1476 = vmul.f32 %v1432, %v1464
    %v1477 = vmul.f32 %v1433, %v1460
    %v1478 = vmul.f32 %v1434, %v1464
    %v1479 = vmul.f32 %v1435, %v1460
    %v1480 = vmul.f32 %v1436, %v1464
    %v1481 = vmul.f32 %v1437, %v1460
    %v1482 = vmul.f32 %v1438, %v1464
    %v1483 = vmul.f32 %v1439, %v1460
    %v1484 = vmul.f32 %v1440, %v1464
    %v1485 = vmul.f32 %v1441, %v1460
    %v1486 = vmul.f32 %v1442, %v1464
    %v1487 = vmul.f32 %v1443, %v1460
    %v1488 = vmul.f32 %v1444, %v1464
    %v1489 = vmul.f32 %v1445, %v1460
    %v1490 = vmul.f32 %v1446, %v1464
    %v1491 = vmul.f32 %v1447, %v1460
    %v1492 = vmul.f32 %v1448, %v1464
    %v1493 = vmul.f32 %v1449, %v1460
    %v1494 = vmul.f32 %v1450, %v1464
    %v1495 = vmul.f32 %v1451, %v1460
    %v1496 = vmul.f32 %v1452, %v1464
    %v1497 = vmul.f32 %v1453, %v1460
    %v1498 = vmul.f32 %v1454, %v1464
    %v1499 = vadd.f32 %v1467, %v1468
    %1500 = vadd.xlane.f32.xlu0 %v1499
    %v1501 = vpop.xlane.xlu0 %1500
    %v1502 = vadd.f32 %v1469, %v1470
    %1503 = vadd.xlane.f32.xlu0 %v1502
    %v1504 = vpop.xlane.xlu0 %1503
    %v1505 = vadd.f32 %v1471, %v1472
    %1506 = vadd.xlane.f32.xlu0 %v1505
    %v1507 = vpop.xlane.xlu0 %1506
    %v1508 = vadd.f32 %v1473, %v1474
    %1509 = vadd.xlane.f32.xlu0 %v1508
    %v1510 = vpop.xlane.xlu0 %1509
    %v1511 = vadd.f32 %v1475, %v1476
    %1512 = vadd.xlane.f32.xlu0 %v1511
    %v1513 = vpop.xlane.xlu0 %1512
    %v1514 = vadd.f32 %v1477, %v1478
    %1515 = vadd.xlane.f32.xlu0 %v1514
    %v1516 = vpop.xlane.xlu0 %1515
    %v1517 = vadd.f32 %v1479, %v1480
    %1518 = vadd.xlane.f32.xlu0 %v1517
    %v1519 = vpop.xlane.xlu0 %1518
    %v1520 = vadd.f32 %v1481, %v1482
    %1521 = vadd.xlane.f32.xlu0 %v1520
    %v1522 = vpop.xlane.xlu0 %1521
    %v1523 = vadd.f32 %v1483, %v1484
    %1524 = vadd.xlane.f32.xlu0 %v1523
    %v1525 = vpop.xlane.xlu0 %1524
    %v1526 = vadd.f32 %v1485, %v1486
    %1527 = vadd.xlane.f32.xlu0 %v1526
    %v1528 = vpop.xlane.xlu0 %1527
    %v1529 = vadd.f32 %v1487, %v1488
    %1530 = vadd.xlane.f32.xlu0 %v1529
    %v1531 = vpop.xlane.xlu0 %1530
    %v1532 = vadd.f32 %v1489, %v1490
    %1533 = vadd.xlane.f32.xlu0 %v1532
    %v1534 = vpop.xlane.xlu0 %1533
    %v1535 = vadd.f32 %v1491, %v1492
    %1536 = vadd.xlane.f32.xlu0 %v1535
    %v1537 = vpop.xlane.xlu0 %1536
    %v1538 = vadd.f32 %v1493, %v1494
    %1539 = vadd.xlane.f32.xlu0 %v1538
    %v1540 = vpop.xlane.xlu0 %1539
    %v1541 = vadd.f32 %v1495, %v1496
    %1542 = vadd.xlane.f32.xlu0 %v1541
    %v1543 = vpop.xlane.xlu0 %1542
    %v1544 = vadd.f32 %v1497, %v1498
    %1545 = vadd.xlane.f32.xlu0 %v1544
    %v1546 = vpop.xlane.xlu0 %1545
    %s1547 = sld [smem:[#allocation2]]
    %v1548 = vstv %s1547
    %v1549 = vadd.f32 %v1501, %v1548
    %v1550 = vadd.f32 %v1504, %v1548
    %v1551 = vadd.f32 %v1507, %v1548
    %v1552 = vadd.f32 %v1510, %v1548
    %v1553 = vadd.f32 %v1513, %v1548
    %v1554 = vadd.f32 %v1516, %v1548
    %v1555 = vadd.f32 %v1519, %v1548
    %v1556 = vadd.f32 %v1522, %v1548
    %v1557 = vadd.f32 %v1525, %v1548
    %v1558 = vadd.f32 %v1528, %v1548
    %v1559 = vadd.f32 %v1531, %v1548
    %v1560 = vadd.f32 %v1534, %v1548
    %v1561 = vadd.f32 %v1537, %v1548
    %v1562 = vadd.f32 %v1540, %v1548
    %v1563 = vadd.f32 %v1543, %v1548
    %v1564 = vadd.f32 %v1546, %v1548
    %v1581 = vlaneseq
    %v1582 = vand.u32 %v1581, 127
    %v1583 = vlaneseq
    %v1584 = vshrl.u32 %v1583, 7
    %v1585 = vsub.s32 %v1582, %v1584
    %v1586 = vrot.slane %v1549, %v1585
    %v1587 = vadd.s32 %v1582, 4294967288
    %v1588 = vlaneseq
    %v1589 = vshrl.u32 %v1588, 7
    %v1590 = vsub.s32 %v1587, %v1589
    %v1591 = vrot.slane %v1550, %v1590
    %vm1592 = vcmask 130112
    %v1593 = vsel %vm1592, %v1591, %v1586
    %v1594 = vadd.s32 %v1582, 4294967280
    %v1595 = vlaneseq
    %v1596 = vshrl.u32 %v1595, 7
    %v1597 = vsub.s32 %v1594, %v1596
    %v1598 = vrot.slane %v1551, %v1597
    %vm1599 = vcmask 195712
    %v1600 = vsel %vm1599, %v1598, %v1593
    %v1601 = vadd.s32 %v1582, 4294967272
    %v1602 = vlaneseq
    %v1603 = vshrl.u32 %v1602, 7
    %v1604 = vsub.s32 %v1601, %v1603
    %v1605 = vrot.slane %v1552, %v1604
    %vm1606 = vcmask 261312
    %v1607 = vsel %vm1606, %v1605, %v1600
    %v1608 = vadd.s32 %v1582, 4294967264
    %v1609 = vlaneseq
    %v1610 = vshrl.u32 %v1609, 7
    %v1611 = vsub.s32 %v1608, %v1610
    %v1612 = vrot.slane %v1553, %v1611
    %vm1613 = vcmask 326912
    %v1614 = vsel %vm1613, %v1612, %v1607
    %v1615 = vadd.s32 %v1582, 4294967256
    %v1616 = vlaneseq
    %v1617 = vshrl.u32 %v1616, 7
    %v1618 = vsub.s32 %v1615, %v1617
    %v1619 = vrot.slane %v1554, %v1618
    %vm1620 = vcmask 392512
    %v1621 = vsel %vm1620, %v1619, %v1614
    %v1622 = vadd.s32 %v1582, 4294967248
    %v1623 = vlaneseq
    %v1624 = vshrl.u32 %v1623, 7
    %v1625 = vsub.s32 %v1622, %v1624
    %v1626 = vrot.slane %v1555, %v1625
    %vm1627 = vcmask 458112
    %v1628 = vsel %vm1627, %v1626, %v1621
    %v1629 = vadd.s32 %v1582, 4294967240
    %v1630 = vlaneseq
    %v1631 = vshrl.u32 %v1630, 7
    %v1632 = vsub.s32 %v1629, %v1631
    %v1633 = vrot.slane %v1556, %v1632
    %vm1634 = vcmask 523712
    %v1635 = vsel %vm1634, %v1633, %v1628
    %v1636 = vadd.s32 %v1582, 4294967232
    %v1637 = vlaneseq
    %v1638 = vshrl.u32 %v1637, 7
    %v1639 = vsub.s32 %v1636, %v1638
    %v1640 = vrot.slane %v1557, %v1639
    %vm1641 = vcmask 589312
    %v1642 = vsel %vm1641, %v1640, %v1635
    %v1643 = vadd.s32 %v1582, 4294967224
    %v1644 = vlaneseq
    %v1645 = vshrl.u32 %v1644, 7
    %v1646 = vsub.s32 %v1643, %v1645
    %v1647 = vrot.slane %v1558, %v1646
    %vm1648 = vcmask 654912
    %v1649 = vsel %vm1648, %v1647, %v1642
    %v1650 = vadd.s32 %v1582, 4294967216
    %v1651 = vlaneseq
    %v1652 = vshrl.u32 %v1651, 7
    %v1653 = vsub.s32 %v1650, %v1652
    %v1654 = vrot.slane %v1559, %v1653
    %vm1655 = vcmask 720512
    %v1656 = vsel %vm1655, %v1654, %v1649
    %v1657 = vadd.s32 %v1582, 4294967208
    %v1658 = vlaneseq
    %v1659 = vshrl.u32 %v1658, 7
    %v1660 = vsub.s32 %v1657, %v1659
    %v1661 = vrot.slane %v1560, %v1660
    %vm1662 = vcmask 786112
    %v1663 = vsel %vm1662, %v1661, %v1656
    %v1664 = vadd.s32 %v1582, 4294967200
    %v1665 = vlaneseq
    %v1666 = vshrl.u32 %v1665, 7
    %v1667 = vsub.s32 %v1664, %v1666
    %v1668 = vrot.slane %v1561, %v1667
    %vm1669 = vcmask 851712
    %v1670 = vsel %vm1669, %v1668, %v1663
    %v1671 = vadd.s32 %v1582, 4294967192
    %v1672 = vlaneseq
    %v1673 = vshrl.u32 %v1672, 7
    %v1674 = vsub.s32 %v1671, %v1673
    %v1675 = vrot.slane %v1562, %v1674
    %vm1676 = vcmask 917312
    %v1677 = vsel %vm1676, %v1675, %v1670
    %v1678 = vadd.s32 %v1582, 4294967184
    %v1679 = vlaneseq
    %v1680 = vshrl.u32 %v1679, 7
    %v1681 = vsub.s32 %v1678, %v1680
    %v1682 = vrot.slane %v1563, %v1681
    %vm1683 = vcmask 982912
    %v1684 = vsel %vm1683, %v1682, %v1677
    %v1685 = vadd.s32 %v1582, 4294967176
    %v1686 = vlaneseq
    %v1687 = vshrl.u32 %v1686, 7
    %v1688 = vsub.s32 %v1685, %v1687
    %v1689 = vrot.slane %v1564, %v1688
    %vm1690 = vcmask 1048512
    %v1691 = vsel %vm1690, %v1689, %v1684
    %1693 = vst [vmem:[#allocation6] sm:$0x1] %v1691
    // Predicated region
    $region50: #{tpu_custom_call.1} parent=1 // pred_check
      _
    $region51: #{tpu_custom_call.1} parent=1 // pred_check_branch
      %1695 = sbr.rel (0) target = $region53
    $region52: #{tpu_custom_call.1} parent=1 // pred_region
      %s1697 = ssub.s32 16, 16
      %1698 = vsyncadd [#allocation5], %s1697
      %s1700 = sshll.u32 [#allocation6], 4
      %s1701 = int_to_ptr.vmem [resolvable:$true] %s1700
      %1703 = dma.vmem_to_hbm [thread:$0]  %s1701, 16, %s11, [#allocation5]
    $region53: #{tpu_custom_call.1} parent=1 // pred_fallthru
      _
    // Predicated region
    $region54: #{tpu_custom_call.1} parent=1 // pred_check
      _
    $region55: #{tpu_custom_call.1} parent=1 // pred_check_branch
      %1705 = sbr.rel (0) target = $region57
    $region56: #{tpu_custom_call.1} parent=1 // pred_region
      %1706 = dma.done [#allocation5], 16
    $region57: #{tpu_custom_call.1} parent=1 // pred_fallthru
      _
    %1707 = vsyncpa [#allocation4], 1
    %1708 = vsyncpa [#allocation5], 1

</llo_original>
